<compile_context>
chip_gen: v5e
topology: v5e:2x2
jax: 0.10.0
libtpu: 0.0.40
codegen_flags: <defaults>
</compile_context>

<pallas_src>
import jax
import jax.numpy as jnp
from jax import lax
from jax.experimental import pallas as pl
from jax.experimental.pallas import tpu as pltpu

C = 16              # channels (in_chs == out_chs)
L = 16              # sequence length (must equal C, see layout note above)
H = 4 * C           # MLP hidden dim (mlp_ratio = 4)
K = 7               # depthwise kernel size
PAD = (K - 1) // 2  # 'same' padding for odd kernel, stride 1
LN_EPS = 1e-6       # timm LayerNorm default eps
GRN_EPS = 1e-6


def _erf(x):
    # Exact-GELU needs erf; Abramowitz & Stegun 7.1.26 (|err| < 1.5e-7,
    # essentially f32-exact) using only ops guaranteed to lower on Mosaic.
    a1, a2, a3, a4, a5 = (0.254829592, -0.284496736, 1.421413741,
                          -1.453152027, 1.061405429)
    p = 0.3275911
    s = jnp.where(x >= 0.0, 1.0, -1.0)
    z = jnp.abs(x)
    t = 1.0 / (1.0 + p * z)
    poly = t * (a1 + t * (a2 + t * (a3 + t * (a4 + t * a5))))
    return s * (1.0 - poly * jnp.exp(-z * z))


def _gelu(x):
    # torch.nn.GELU() default = exact (erf-based) GELU.
    return 0.5 * x * (1.0 + _erf(x * 0.7071067811865476))


def convnext_block_kernel(x_ref, wdw_ref, bdw_ref, w1_ref, b1_ref,
                          grnw_ref, grnb_ref, w2_ref, b2_ref, gamma_ref,
                          out_ref, xpad_sc, t_sc):
    B = x_ref.shape[0]                       # batch items handled this step
    x = x_ref[...]                           # (B, C, L) NCL block

    # ---- 'same' zero padding done in VMEM.  Re-zeroed every step (scratch
    #      persists across grid steps / cores, so no program_id==0 init).
    xpad_sc[...] = jnp.zeros_like(xpad_sc)
    xpad_sc[:, :, PAD:PAD + L] = x

    # ---- depthwise Conv1d: kernel_size=7, groups=C, stride=1, padding='same'
    y = wdw_ref[:, 0:1] * xpad_sc[:, :, 0:L]             # (C,1)*(B,C,L)
    for k in range(1, K):                                # 7 static shifted taps
        y = y + wdw_ref[:, k:k + 1] * xpad_sc[:, :, k:k + L]
    y = y + bdw_ref[...]                                 # (C, 1) bias broadcast

    # ---- permute(0, 2, 1): NCL -> NLC.  Per-item 2-D transposes through a
    #      VMEM scratch (B is a small compile-time constant).
    for b in range(B):
        t_sc[b] = y[b].T                                 # (L, C)
    t = t_sc[...].reshape(B * L, C)                      # (B*L, C) slab

    # ---- LayerNorm over channels (affine folded into fc1 by the wrapper)
    mu = jnp.mean(t, axis=-1, keepdims=True)
    var = jnp.mean(jnp.square(t - mu), axis=-1, keepdims=True)
    t = (t - mu) * lax.rsqrt(var + LN_EPS)

    # ---- MLP fc1 (LN affine pre-folded) + exact GELU, one big matmul
    h = jnp.dot(t, w1_ref[...], preferred_element_type=jnp.float32) + b1_ref[...]
    h = _gelu(h)                                         # (B*L, H)

    # ---- GlobalResponseNorm1D (channels_last): L2 norm over spatial dim (L)
    h3 = h.reshape(B, L, H)
    g = jnp.sqrt(jnp.sum(h3 * h3, axis=1, keepdims=True))        # (B, 1, H)
    gm = jnp.mean(g, axis=-1, keepdims=True)                     # (B, 1, 1)
    xn = g * (1.0 / (gm + GRN_EPS))                              # 1 divide / item
    h3 = h3 + grnb_ref[...] + grnw_ref[...] * (h3 * xn)          # x + addcmul(b,w,x*xn)

    # ---- MLP fc2, one big matmul
    o = jnp.dot(h3.reshape(B * L, H), w2_ref[...],
                preferred_element_type=jnp.float32) + b2_ref[...]
    o = o.reshape(B, L, C)

    # ---- layer scale: gamma.reshape(1,-1,1) broadcasts over dim 1 (= L, the
    #      PyTorch layout quirk); drop_path = Identity; residual add
    #      (N, L, C) + (N, C, L) with L == C.
    out_ref[...] = o * gamma_ref[...] + x


def _full_spec(shape):
    nd = len(shape)
    return pl.BlockSpec(shape, lambda n, _nd=nd: (0,) * _nd)


def _pick_block_b(n, target):
    b = max(1, min(target, n))
    if n >= 2:
        b = min(b, n // 2)       # keep >= 2 grid steps (both v7x cores busy)
    while n % b:
        b -= 1
    return b


def convnext_block_1d(x, params, *, block_b=8):
    """x: (N, C, L) float32, NCL layout.  Returns (N, L, C) float32."""
    N = x.shape[0]
    assert x.shape[1:] == (C, L)
    B = _pick_block_b(N, block_b)            # sweepable; keep modest (<=16)

    # Fold the LayerNorm affine into fc1 (wrapper-side, outside the hot loop):
    #   (t*ln_w + ln_b) @ W1 + b1 == t @ (ln_w[:,None]*W1) + (ln_b @ W1 + b1)
    w1_eff = params["ln_w"].reshape(C, 1) * params["w1"]                  # (C, H)
    b1_eff = params["ln_b"].reshape(1, C) @ params["w1"] + params["b1"]   # (1, H)

    in_specs = [
        pl.BlockSpec((B, C, L), lambda n: (n, 0, 0)),    # input, B items/step
        _full_spec((C, K)),    # depthwise conv weight (C, 1, K) squeezed
        _full_spec((C, 1)),    # depthwise conv bias
        _full_spec((C, H)),    # fc1 weight (LN affine folded in)
        _full_spec((1, H)),    # fc1 bias  (LN affine folded in)
        _full_spec((1, H)),    # GRN weight
        _full_spec((1, H)),    # GRN bias
        _full_spec((H, C)),    # fc2 weight (transposed vs torch Linear)
        _full_spec((1, C)),    # fc2 bias
        _full_spec((C, 1)),    # layer-scale gamma
    ]

    return pl.pallas_call(
        convnext_block_kernel,
        out_shape=jax.ShapeDtypeStruct((N, L, C), jnp.float32),
        grid_spec=pltpu.PrefetchScalarGridSpec(
            num_scalar_prefetch=0,
            grid=(N // B,),
            in_specs=in_specs,
            out_specs=pl.BlockSpec((B, L, C), lambda n: (n, 0, 0)),
            scratch_shapes=[
                pltpu.VMEM((B, C, L + 2 * PAD), jnp.float32),  # padded input
                pltpu.VMEM((B, L, C), jnp.float32),            # NCL->NLC stage
            ],
        ),
        compiler_params=pltpu.CompilerParams(
            dimension_semantics=("parallel",)),
    )(x, params["w_dw"], params["b_dw"], w1_eff, b1_eff,
      params["grn_w"], params["grn_b"], params["w2"], params["b2"],
      params["gamma"])


if __name__ == "__main__":
    key = jax.random.PRNGKey(0)
    ks = jax.random.split(key, 12)

    def rnd(k, shape, scale=0.1):
        return (scale * jax.random.normal(k, shape)).astype(jnp.float32)

    # Deterministic synthetic parameters (shapes from the module's __init__).
    params = {
        "w_dw":  rnd(ks[0], (C, K)),                    # Conv1d (C, 1, K) squeezed
        "b_dw":  rnd(ks[1], (C, 1)),
        "ln_w":  1.0 + rnd(ks[2], (1, C)),
        "ln_b":  rnd(ks[3], (1, C)),
        "w1":    rnd(ks[4], (C, H)),                    # Linear(C, H) weight^T
        "b1":    rnd(ks[5], (1, H)),
        "grn_w": rnd(ks[6], (1, H)),
        "grn_b": rnd(ks[7], (1, H)),
        "w2":    rnd(ks[8], (H, C)),                    # Linear(H, C) weight^T
        "b2":    rnd(ks[9], (1, C)),
        "gamma": jnp.full((C, 1), 1e-6, jnp.float32),   # ls_init_value * ones
    }

    N = 8
    x = jax.random.normal(ks[10], (N, C, L), dtype=jnp.float32)  # (N, C, L)

    out = convnext_block_1d(x, params, block_b=8)   # picks B=4 -> grid=(2,)
    jax.block_until_ready(out)
    print("KERNEL_OK")
</pallas_src>

<mosaic_0001>
module attributes {stable_mosaic.version = 11 : i64} {
  func.func @convnext_block_kernel(%arg0: i32, %arg1: memref<4x16x16xf32, #tpu.memory_space<vmem>>, %arg2: memref<16x7xf32, #tpu.memory_space<vmem>>, %arg3: memref<16x1xf32, #tpu.memory_space<vmem>>, %arg4: memref<16x64xf32, #tpu.memory_space<vmem>>, %arg5: memref<1x64xf32, #tpu.memory_space<vmem>>, %arg6: memref<1x64xf32, #tpu.memory_space<vmem>>, %arg7: memref<1x64xf32, #tpu.memory_space<vmem>>, %arg8: memref<64x16xf32, #tpu.memory_space<vmem>>, %arg9: memref<1x16xf32, #tpu.memory_space<vmem>>, %arg10: memref<16x1xf32, #tpu.memory_space<vmem>>, %arg11: memref<4x16x16xf32, #tpu.memory_space<vmem>>, %arg12: memref<4x16x22xf32, #tpu.memory_space<vmem>>, %arg13: memref<4x16x16xf32, #tpu.memory_space<vmem>>) attributes {dimension_semantics = [#tpu.dimension_semantics<parallel>], iteration_bounds = array<i64: 2>, scalar_prefetch = 0 : i64, scratch_operands = 2 : i64, tpu.core_type = #tpu.core_type<tc>, window_params = [{transform_indices = @transform_0, window_bounds = array<i64: 4, 16, 16>}, {pipeline_mode = #tpu.pipeline_mode<synchronous>, transform_indices = @transform_1, window_bounds = array<i64: 16, 7>}, {pipeline_mode = #tpu.pipeline_mode<synchronous>, transform_indices = @transform_2, window_bounds = array<i64: 16, 1>}, {pipeline_mode = #tpu.pipeline_mode<synchronous>, transform_indices = @transform_3, window_bounds = array<i64: 16, 64>}, {pipeline_mode = #tpu.pipeline_mode<synchronous>, transform_indices = @transform_4, window_bounds = array<i64: 1, 64>}, {pipeline_mode = #tpu.pipeline_mode<synchronous>, transform_indices = @transform_5, window_bounds = array<i64: 1, 64>}, {pipeline_mode = #tpu.pipeline_mode<synchronous>, transform_indices = @transform_6, window_bounds = array<i64: 1, 64>}, {pipeline_mode = #tpu.pipeline_mode<synchronous>, transform_indices = @transform_7, window_bounds = array<i64: 64, 16>}, {pipeline_mode = #tpu.pipeline_mode<synchronous>, transform_indices = @transform_8, window_bounds = array<i64: 1, 16>}, {pipeline_mode = #tpu.pipeline_mode<synchronous>, transform_indices = @transform_9, window_bounds = array<i64: 16, 1>}, {transform_indices = @transform_10, window_bounds = array<i64: 4, 16, 16>}]} {
    %c0 = arith.constant 0 : index
    %c0_0 = arith.constant 0 : index
    %c0_1 = arith.constant 0 : index
    %0 = vector.load %arg1[%c0, %c0_0, %c0_1] : memref<4x16x16xf32, #tpu.memory_space<vmem>>, vector<4x16x16xf32>
    %cst = arith.constant 0.000000e+00 : f32
    %1 = vector.broadcast %cst : f32 to vector<4x16x22xf32>
    %c0_2 = arith.constant 0 : index
    %c0_3 = arith.constant 0 : index
    %c0_4 = arith.constant 0 : index
    %2 = vector.load %arg12[%c0_2, %c0_3, %c0_4] : memref<4x16x22xf32, #tpu.memory_space<vmem>>, vector<4x16x22xf32>
    tpu.vector_store %arg12[%c0_2, %c0_3, %c0_4], %1 {strides = array<i32>} : memref<4x16x22xf32, #tpu.memory_space<vmem>>, vector<4x16x22xf32>,
    %c0_5 = arith.constant 0 : index
    %c0_6 = arith.constant 0 : index
    %c3 = arith.constant 3 : index
    %3 = vector.load %arg12[%c0_5, %c0_6, %c3] : memref<4x16x22xf32, #tpu.memory_space<vmem>>, vector<4x16x16xf32>
    tpu.vector_store %arg12[%c0_5, %c0_6, %c3], %0 {strides = array<i32>} : memref<4x16x22xf32, #tpu.memory_space<vmem>>, vector<4x16x16xf32>,
    %c0_7 = arith.constant 0 : index
    %c0_8 = arith.constant 0 : index
    %4 = vector.load %arg2[%c0_7, %c0_8] : memref<16x7xf32, #tpu.memory_space<vmem>>, vector<16x1xf32>
    %c0_9 = arith.constant 0 : index
    %c0_10 = arith.constant 0 : index
    %c0_11 = arith.constant 0 : index
    %5 = vector.load %arg12[%c0_9, %c0_10, %c0_11] : memref<4x16x22xf32, #tpu.memory_space<vmem>>, vector<4x16x16xf32>
    %6 = vector.shape_cast %4 : vector<16x1xf32> to vector<1x16x1xf32>
    %7 = vector.broadcast %6 : vector<1x16x1xf32> to vector<4x16x16xf32>
    %8 = arith.mulf %7, %5 : vector<4x16x16xf32>
    %c0_12 = arith.constant 0 : index
    %c1 = arith.constant 1 : index
    %9 = vector.load %arg2[%c0_12, %c1] : memref<16x7xf32, #tpu.memory_space<vmem>>, vector<16x1xf32>
    %c0_13 = arith.constant 0 : index
    %c0_14 = arith.constant 0 : index
    %c1_15 = arith.constant 1 : index
    %10 = vector.load %arg12[%c0_13, %c0_14, %c1_15] : memref<4x16x22xf32, #tpu.memory_space<vmem>>, vector<4x16x16xf32>
    %11 = vector.shape_cast %9 : vector<16x1xf32> to vector<1x16x1xf32>
    %12 = vector.broadcast %11 : vector<1x16x1xf32> to vector<4x16x16xf32>
    %13 = arith.mulf %12, %10 : vector<4x16x16xf32>
    %14 = arith.addf %8, %13 : vector<4x16x16xf32>
    %c0_16 = arith.constant 0 : index
    %c2 = arith.constant 2 : index
    %15 = vector.load %arg2[%c0_16, %c2] : memref<16x7xf32, #tpu.memory_space<vmem>>, vector<16x1xf32>
    %c0_17 = arith.constant 0 : index
    %c0_18 = arith.constant 0 : index
    %c2_19 = arith.constant 2 : index
    %16 = vector.load %arg12[%c0_17, %c0_18, %c2_19] : memref<4x16x22xf32, #tpu.memory_space<vmem>>, vector<4x16x16xf32>
    %17 = vector.shape_cast %15 : vector<16x1xf32> to vector<1x16x1xf32>
    %18 = vector.broadcast %17 : vector<1x16x1xf32> to vector<4x16x16xf32>
    %19 = arith.mulf %18, %16 : vector<4x16x16xf32>
    %20 = arith.addf %14, %19 : vector<4x16x16xf32>
    %c0_20 = arith.constant 0 : index
    %c3_21 = arith.constant 3 : index
    %21 = vector.load %arg2[%c0_20, %c3_21] : memref<16x7xf32, #tpu.memory_space<vmem>>, vector<16x1xf32>
    %c0_22 = arith.constant 0 : index
    %c0_23 = arith.constant 0 : index
    %c3_24 = arith.constant 3 : index
    %22 = vector.load %arg12[%c0_22, %c0_23, %c3_24] : memref<4x16x22xf32, #tpu.memory_space<vmem>>, vector<4x16x16xf32>
    %23 = vector.shape_cast %21 : vector<16x1xf32> to vector<1x16x1xf32>
    %24 = vector.broadcast %23 : vector<1x16x1xf32> to vector<4x16x16xf32>
    %25 = arith.mulf %24, %22 : vector<4x16x16xf32>
    %26 = arith.addf %20, %25 : vector<4x16x16xf32>
    %c0_25 = arith.constant 0 : index
    %c4 = arith.constant 4 : index
    %27 = vector.load %arg2[%c0_25, %c4] : memref<16x7xf32, #tpu.memory_space<vmem>>, vector<16x1xf32>
    %c0_26 = arith.constant 0 : index
    %c0_27 = arith.constant 0 : index
    %c4_28 = arith.constant 4 : index
    %28 = vector.load %arg12[%c0_26, %c0_27, %c4_28] : memref<4x16x22xf32, #tpu.memory_space<vmem>>, vector<4x16x16xf32>
    %29 = vector.shape_cast %27 : vector<16x1xf32> to vector<1x16x1xf32>
    %30 = vector.broadcast %29 : vector<1x16x1xf32> to vector<4x16x16xf32>
    %31 = arith.mulf %30, %28 : vector<4x16x16xf32>
    %32 = arith.addf %26, %31 : vector<4x16x16xf32>
    %c0_29 = arith.constant 0 : index
    %c5 = arith.constant 5 : index
    %33 = vector.load %arg2[%c0_29, %c5] : memref<16x7xf32, #tpu.memory_space<vmem>>, vector<16x1xf32>
    %c0_30 = arith.constant 0 : index
    %c0_31 = arith.constant 0 : index
    %c5_32 = arith.constant 5 : index
    %34 = vector.load %arg12[%c0_30, %c0_31, %c5_32] : memref<4x16x22xf32, #tpu.memory_space<vmem>>, vector<4x16x16xf32>
    %35 = vector.shape_cast %33 : vector<16x1xf32> to vector<1x16x1xf32>
    %36 = vector.broadcast %35 : vector<1x16x1xf32> to vector<4x16x16xf32>
    %37 = arith.mulf %36, %34 : vector<4x16x16xf32>
    %38 = arith.addf %32, %37 : vector<4x16x16xf32>
    %c0_33 = arith.constant 0 : index
    %c6 = arith.constant 6 : index
    %39 = vector.load %arg2[%c0_33, %c6] : memref<16x7xf32, #tpu.memory_space<vmem>>, vector<16x1xf32>
    %c0_34 = arith.constant 0 : index
    %c0_35 = arith.constant 0 : index
    %c6_36 = arith.constant 6 : index
    %40 = vector.load %arg12[%c0_34, %c0_35, %c6_36] : memref<4x16x22xf32, #tpu.memory_space<vmem>>, vector<4x16x16xf32>
    %41 = vector.shape_cast %39 : vector<16x1xf32> to vector<1x16x1xf32>
    %42 = vector.broadcast %41 : vector<1x16x1xf32> to vector<4x16x16xf32>
    %43 = arith.mulf %42, %40 : vector<4x16x16xf32>
    %44 = arith.addf %38, %43 : vector<4x16x16xf32>
    %c0_37 = arith.constant 0 : index
    %c0_38 = arith.constant 0 : index
    %45 = vector.load %arg3[%c0_37, %c0_38] : memref<16x1xf32, #tpu.memory_space<vmem>>, vector<16x1xf32>
    %46 = vector.shape_cast %45 : vector<16x1xf32> to vector<1x16x1xf32>
    %47 = vector.broadcast %46 : vector<1x16x1xf32> to vector<4x16x16xf32>
    %48 = arith.addf %44, %47 : vector<4x16x16xf32>
    %49 = vector.extract_strided_slice %48 {offsets = [0, 0, 0], sizes = [1, 16, 16], strides = [1, 1, 1]} : vector<4x16x16xf32> to vector<1x16x16xf32>
    %50 = vector.shape_cast %49 : vector<1x16x16xf32> to vector<16x16xf32>
    %51 = tpu.transpose %50, [1, 0] : vector<16x16xf32> -> vector<16x16xf32>
    %c0_39 = arith.constant 0 : index
    %c0_40 = arith.constant 0 : index
    %c0_41 = arith.constant 0 : index
    %52 = vector.load %arg13[%c0_39, %c0_40, %c0_41] : memref<4x16x16xf32, #tpu.memory_space<vmem>>, vector<1x16x16xf32>
    %53 = vector.shape_cast %52 : vector<1x16x16xf32> to vector<16x16xf32>
    %54 = vector.shape_cast %51 : vector<16x16xf32> to vector<1x16x16xf32>
    tpu.vector_store %arg13[%c0_39, %c0_40, %c0_41], %54 {strides = array<i32>} : memref<4x16x16xf32, #tpu.memory_space<vmem>>, vector<1x16x16xf32>,
    %55 = vector.extract_strided_slice %48 {offsets = [1, 0, 0], sizes = [1, 16, 16], strides = [1, 1, 1]} : vector<4x16x16xf32> to vector<1x16x16xf32>
    %56 = vector.shape_cast %55 : vector<1x16x16xf32> to vector<16x16xf32>
    %57 = tpu.transpose %56, [1, 0] : vector<16x16xf32> -> vector<16x16xf32>
    %c1_42 = arith.constant 1 : index
    %c0_43 = arith.constant 0 : index
    %c0_44 = arith.constant 0 : index
    %58 = vector.load %arg13[%c1_42, %c0_43, %c0_44] : memref<4x16x16xf32, #tpu.memory_space<vmem>>, vector<1x16x16xf32>
    %59 = vector.shape_cast %58 : vector<1x16x16xf32> to vector<16x16xf32>
    %60 = vector.shape_cast %57 : vector<16x16xf32> to vector<1x16x16xf32>
    tpu.vector_store %arg13[%c1_42, %c0_43, %c0_44], %60 {strides = array<i32>} : memref<4x16x16xf32, #tpu.memory_space<vmem>>, vector<1x16x16xf32>,
    %61 = vector.extract_strided_slice %48 {offsets = [2, 0, 0], sizes = [1, 16, 16], strides = [1, 1, 1]} : vector<4x16x16xf32> to vector<1x16x16xf32>
    %62 = vector.shape_cast %61 : vector<1x16x16xf32> to vector<16x16xf32>
    %63 = tpu.transpose %62, [1, 0] : vector<16x16xf32> -> vector<16x16xf32>
    %c2_45 = arith.constant 2 : index
    %c0_46 = arith.constant 0 : index
    %c0_47 = arith.constant 0 : index
    %64 = vector.load %arg13[%c2_45, %c0_46, %c0_47] : memref<4x16x16xf32, #tpu.memory_space<vmem>>, vector<1x16x16xf32>
    %65 = vector.shape_cast %64 : vector<1x16x16xf32> to vector<16x16xf32>
    %66 = vector.shape_cast %63 : vector<16x16xf32> to vector<1x16x16xf32>
    tpu.vector_store %arg13[%c2_45, %c0_46, %c0_47], %66 {strides = array<i32>} : memref<4x16x16xf32, #tpu.memory_space<vmem>>, vector<1x16x16xf32>,
    %67 = vector.extract_strided_slice %48 {offsets = [3, 0, 0], sizes = [1, 16, 16], strides = [1, 1, 1]} : vector<4x16x16xf32> to vector<1x16x16xf32>
    %68 = vector.shape_cast %67 : vector<1x16x16xf32> to vector<16x16xf32>
    %69 = tpu.transpose %68, [1, 0] : vector<16x16xf32> -> vector<16x16xf32>
    %c3_48 = arith.constant 3 : index
    %c0_49 = arith.constant 0 : index
    %c0_50 = arith.constant 0 : index
    %70 = vector.load %arg13[%c3_48, %c0_49, %c0_50] : memref<4x16x16xf32, #tpu.memory_space<vmem>>, vector<1x16x16xf32>
    %71 = vector.shape_cast %70 : vector<1x16x16xf32> to vector<16x16xf32>
    %72 = vector.shape_cast %69 : vector<16x16xf32> to vector<1x16x16xf32>
    tpu.vector_store %arg13[%c3_48, %c0_49, %c0_50], %72 {strides = array<i32>} : memref<4x16x16xf32, #tpu.memory_space<vmem>>, vector<1x16x16xf32>,
    %c0_51 = arith.constant 0 : index
    %c0_52 = arith.constant 0 : index
    %c0_53 = arith.constant 0 : index
    %73 = vector.load %arg13[%c0_51, %c0_52, %c0_53] : memref<4x16x16xf32, #tpu.memory_space<vmem>>, vector<4x16x16xf32>
    %74 = vector.shape_cast %73 : vector<4x16x16xf32> to vector<64x16xf32>
    %cst_54 = arith.constant dense<0.000000e+00> : vector<64xf32>
    %75 = vector.multi_reduction <add>, %74, %cst_54 [1] : vector<64x16xf32> to vector<64xf32>
    %76 = vector.shape_cast %75 : vector<64xf32> to vector<64x1xf32>
    %cst_55 = arith.constant 1.600000e+01 : f32
    %77 = vector.broadcast %cst_55 : f32 to vector<64x1xf32>
    %78 = arith.divf %76, %77 : vector<64x1xf32>
    %79 = vector.broadcast %78 : vector<64x1xf32> to vector<64x16xf32>
    %80 = arith.subf %74, %79 : vector<64x16xf32>
    %81 = arith.mulf %80, %80 : vector<64x16xf32>
    %cst_56 = arith.constant dense<0.000000e+00> : vector<64xf32>
    %82 = vector.multi_reduction <add>, %81, %cst_56 [1] : vector<64x16xf32> to vector<64xf32>
    %83 = vector.shape_cast %82 : vector<64xf32> to vector<64x1xf32>
    %cst_57 = arith.constant 1.600000e+01 : f32
    %84 = vector.broadcast %cst_57 : f32 to vector<64x1xf32>
    %85 = arith.divf %83, %84 : vector<64x1xf32>
    %86 = vector.broadcast %78 : vector<64x1xf32> to vector<64x16xf32>
    %87 = arith.subf %74, %86 : vector<64x16xf32>
    %cst_58 = arith.constant 9.99999997E-7 : f32
    %88 = vector.broadcast %cst_58 : f32 to vector<64x1xf32>
    %89 = arith.addf %85, %88 : vector<64x1xf32>
    %90 = math.rsqrt %89 : vector<64x1xf32>
    %91 = vector.broadcast %90 : vector<64x1xf32> to vector<64x16xf32>
    %92 = arith.mulf %87, %91 : vector<64x16xf32>
    %c0_59 = arith.constant 0 : index
    %c0_60 = arith.constant 0 : index
    %93 = vector.load %arg4[%c0_59, %c0_60] : memref<16x64xf32, #tpu.memory_space<vmem>>, vector<16x64xf32>
    %cst_61 = arith.constant dense<0.000000e+00> : vector<64x64xf32>
    %94 = tpu.matmul %92, %93, %cst_61 {dimension_numbers = #tpu.dot_dimension_numbers<[1], [0], [0], [1], [0, 0, 1, 1], [], []>} : vector<64x16xf32>, vector<16x64xf32>, vector<64x64xf32> -> vector<64x64xf32>
    %c0_62 = arith.constant 0 : index
    %c0_63 = arith.constant 0 : index
    %95 = vector.load %arg5[%c0_62, %c0_63] : memref<1x64xf32, #tpu.memory_space<vmem>>, vector<1x64xf32>
    %96 = vector.broadcast %95 : vector<1x64xf32> to vector<64x64xf32>
    %97 = arith.addf %94, %96 : vector<64x64xf32>
    %cst_64 = arith.constant 5.000000e-01 : f32
    %98 = vector.broadcast %cst_64 : f32 to vector<64x64xf32>
    %99 = arith.mulf %98, %97 : vector<64x64xf32>
    %cst_65 = arith.constant 0.707106769 : f32
    %100 = vector.broadcast %cst_65 : f32 to vector<64x64xf32>
    %101 = arith.mulf %97, %100 : vector<64x64xf32>
    %cst_66 = arith.constant 0.000000e+00 : f32
    %102 = vector.broadcast %cst_66 : f32 to vector<64x64xf32>
    %103 = arith.cmpf oge, %101, %102 : vector<64x64xf32>
    %cst_67 = arith.constant 1.000000e+00 : f32
    %cst_68 = arith.constant -1.000000e+00 : f32
    %104 = vector.broadcast %cst_67 : f32 to vector<64x64xf32>
    %105 = vector.broadcast %cst_68 : f32 to vector<64x64xf32>
    %106 = arith.select %103, %104, %105 : vector<64x64xi1>, vector<64x64xf32>
    %107 = math.absf %101 : vector<64x64xf32>
    %cst_69 = arith.constant 0.327591091 : f32
    %108 = vector.broadcast %cst_69 : f32 to vector<64x64xf32>
    %109 = arith.mulf %108, %107 : vector<64x64xf32>
    %cst_70 = arith.constant 1.000000e+00 : f32
    %110 = vector.broadcast %cst_70 : f32 to vector<64x64xf32>
    %111 = arith.addf %110, %109 : vector<64x64xf32>
    %cst_71 = arith.constant 1.000000e+00 : f32
    %112 = vector.broadcast %cst_71 : f32 to vector<64x64xf32>
    %113 = arith.divf %112, %111 : vector<64x64xf32>
    %cst_72 = arith.constant 1.06140542 : f32
    %114 = vector.broadcast %cst_72 : f32 to vector<64x64xf32>
    %115 = arith.mulf %113, %114 : vector<64x64xf32>
    %cst_73 = arith.constant -1.45315206 : f32
    %116 = vector.broadcast %cst_73 : f32 to vector<64x64xf32>
    %117 = arith.addf %116, %115 : vector<64x64xf32>
    %118 = arith.mulf %113, %117 : vector<64x64xf32>
    %cst_74 = arith.constant 1.42141378 : f32
    %119 = vector.broadcast %cst_74 : f32 to vector<64x64xf32>
    %120 = arith.addf %119, %118 : vector<64x64xf32>
    %121 = arith.mulf %113, %120 : vector<64x64xf32>
    %cst_75 = arith.constant -0.284496725 : f32
    %122 = vector.broadcast %cst_75 : f32 to vector<64x64xf32>
    %123 = arith.addf %122, %121 : vector<64x64xf32>
    %124 = arith.mulf %113, %123 : vector<64x64xf32>
    %cst_76 = arith.constant 0.254829586 : f32
    %125 = vector.broadcast %cst_76 : f32 to vector<64x64xf32>
    %126 = arith.addf %125, %124 : vector<64x64xf32>
    %127 = arith.mulf %113, %126 : vector<64x64xf32>
    %cst_77 = arith.constant 0.000000e+00 : f32
    %128 = vector.broadcast %cst_77 : f32 to vector<64x64xf32>
    %129 = arith.subf %128, %107 : vector<64x64xf32>
    %130 = arith.mulf %129, %107 : vector<64x64xf32>
    %131 = math.exp %130 : vector<64x64xf32>
    %132 = arith.mulf %127, %131 : vector<64x64xf32>
    %cst_78 = arith.constant 1.000000e+00 : f32
    %133 = vector.broadcast %cst_78 : f32 to vector<64x64xf32>
    %134 = arith.subf %133, %132 : vector<64x64xf32>
    %135 = arith.mulf %106, %134 : vector<64x64xf32>
    %cst_79 = arith.constant 1.000000e+00 : f32
    %136 = vector.broadcast %cst_79 : f32 to vector<64x64xf32>
    %137 = arith.addf %136, %135 : vector<64x64xf32>
    %138 = arith.mulf %99, %137 : vector<64x64xf32>
    %139 = vector.shape_cast %138 : vector<64x64xf32> to vector<4x16x64xf32>
    %140 = arith.mulf %139, %139 : vector<4x16x64xf32>
    %cst_80 = arith.constant dense<0.000000e+00> : vector<4x64xf32>
    %141 = vector.multi_reduction <add>, %140, %cst_80 [1] : vector<4x16x64xf32> to vector<4x64xf32>
    %142 = vector.shape_cast %141 : vector<4x64xf32> to vector<4x1x64xf32>
    %143 = math.sqrt %142 : vector<4x1x64xf32>
    %cst_81 = arith.constant dense<0.000000e+00> : vector<4x1xf32>
    %144 = vector.multi_reduction <add>, %143, %cst_81 [2] : vector<4x1x64xf32> to vector<4x1xf32>
    %145 = vector.shape_cast %144 : vector<4x1xf32> to vector<4x1x1xf32>
    %cst_82 = arith.constant 6.400000e+01 : f32
    %146 = vector.broadcast %cst_82 : f32 to vector<4x1x1xf32>
    %147 = arith.divf %145, %146 : vector<4x1x1xf32>
    %cst_83 = arith.constant 9.99999997E-7 : f32
    %148 = vector.broadcast %cst_83 : f32 to vector<4x1x1xf32>
    %149 = arith.addf %147, %148 : vector<4x1x1xf32>
    %cst_84 = arith.constant 1.000000e+00 : f32
    %150 = vector.broadcast %cst_84 : f32 to vector<4x1x1xf32>
    %151 = arith.divf %150, %149 : vector<4x1x1xf32>
    %152 = vector.broadcast %151 : vector<4x1x1xf32> to vector<4x1x64xf32>
    %153 = arith.mulf %143, %152 : vector<4x1x64xf32>
    %c0_85 = arith.constant 0 : index
    %c0_86 = arith.constant 0 : index
    %154 = vector.load %arg7[%c0_85, %c0_86] : memref<1x64xf32, #tpu.memory_space<vmem>>, vector<1x64xf32>
    %155 = vector.shape_cast %154 : vector<1x64xf32> to vector<1x1x64xf32>
    %156 = vector.broadcast %155 : vector<1x1x64xf32> to vector<4x16x64xf32>
    %157 = arith.addf %139, %156 : vector<4x16x64xf32>
    %c0_87 = arith.constant 0 : index
    %c0_88 = arith.constant 0 : index
    %158 = vector.load %arg6[%c0_87, %c0_88] : memref<1x64xf32, #tpu.memory_space<vmem>>, vector<1x64xf32>
    %159 = vector.broadcast %153 : vector<4x1x64xf32> to vector<4x16x64xf32>
    %160 = arith.mulf %139, %159 : vector<4x16x64xf32>
    %161 = vector.shape_cast %158 : vector<1x64xf32> to vector<1x1x64xf32>
    %162 = vector.broadcast %161 : vector<1x1x64xf32> to vector<4x16x64xf32>
    %163 = arith.mulf %162, %160 : vector<4x16x64xf32>
    %164 = arith.addf %157, %163 : vector<4x16x64xf32>
    %165 = vector.shape_cast %164 : vector<4x16x64xf32> to vector<64x64xf32>
    %c0_89 = arith.constant 0 : index
    %c0_90 = arith.constant 0 : index
    %166 = vector.load %arg8[%c0_89, %c0_90] : memref<64x16xf32, #tpu.memory_space<vmem>>, vector<64x16xf32>
    %cst_91 = arith.constant dense<0.000000e+00> : vector<64x16xf32>
    %167 = tpu.matmul %165, %166, %cst_91 {dimension_numbers = #tpu.dot_dimension_numbers<[1], [0], [0], [1], [0, 0, 1, 1], [], []>} : vector<64x64xf32>, vector<64x16xf32>, vector<64x16xf32> -> vector<64x16xf32>
    %c0_92 = arith.constant 0 : index
    %c0_93 = arith.constant 0 : index
    %168 = vector.load %arg9[%c0_92, %c0_93] : memref<1x16xf32, #tpu.memory_space<vmem>>, vector<1x16xf32>
    %169 = vector.broadcast %168 : vector<1x16xf32> to vector<64x16xf32>
    %170 = arith.addf %167, %169 : vector<64x16xf32>
    %171 = vector.shape_cast %170 : vector<64x16xf32> to vector<4x16x16xf32>
    %c0_94 = arith.constant 0 : index
    %c0_95 = arith.constant 0 : index
    %172 = vector.load %arg10[%c0_94, %c0_95] : memref<16x1xf32, #tpu.memory_space<vmem>>, vector<16x1xf32>
    %173 = vector.shape_cast %172 : vector<16x1xf32> to vector<1x16x1xf32>
    %174 = vector.broadcast %173 : vector<1x16x1xf32> to vector<4x16x16xf32>
    %175 = arith.mulf %171, %174 : vector<4x16x16xf32>
    %176 = arith.addf %175, %0 : vector<4x16x16xf32>
    %c0_96 = arith.constant 0 : index
    %c0_97 = arith.constant 0 : index
    %c0_98 = arith.constant 0 : index
    %177 = vector.load %arg11[%c0_96, %c0_97, %c0_98] : memref<4x16x16xf32, #tpu.memory_space<vmem>>, vector<4x16x16xf32>
    tpu.vector_store %arg11[%c0_96, %c0_97, %c0_98], %176 {strides = array<i32>} : memref<4x16x16xf32, #tpu.memory_space<vmem>>, vector<4x16x16xf32>,
    return
  }
  func.func @transform_0(%arg0: i32) -> (i32, i32, i32) {
    %c0_i32 = arith.constant 0 : i32
    %c0_i32_0 = arith.constant 0 : i32
    %c0_i32_1 = arith.constant 0 : i32
    return %arg0, %c0_i32, %c0_i32_0 : i32, i32, i32
  }
  func.func @transform_1(%arg0: i32) -> (i32, i32) {
    %c0_i32 = arith.constant 0 : i32
    %c0_i32_0 = arith.constant 0 : i32
    %c0_i32_1 = arith.constant 0 : i32
    return %c0_i32, %c0_i32_0 : i32, i32
  }
  func.func @transform_2(%arg0: i32) -> (i32, i32) {
    %c0_i32 = arith.constant 0 : i32
    %c0_i32_0 = arith.constant 0 : i32
    %c0_i32_1 = arith.constant 0 : i32
    return %c0_i32, %c0_i32_0 : i32, i32
  }
  func.func @transform_3(%arg0: i32) -> (i32, i32) {
    %c0_i32 = arith.constant 0 : i32
    %c0_i32_0 = arith.constant 0 : i32
    %c0_i32_1 = arith.constant 0 : i32
    return %c0_i32, %c0_i32_0 : i32, i32
  }
  func.func @transform_4(%arg0: i32) -> (i32, i32) {
    %c0_i32 = arith.constant 0 : i32
    %c0_i32_0 = arith.constant 0 : i32
    %c0_i32_1 = arith.constant 0 : i32
    return %c0_i32, %c0_i32_0 : i32, i32
  }
  func.func @transform_5(%arg0: i32) -> (i32, i32) {
    %c0_i32 = arith.constant 0 : i32
    %c0_i32_0 = arith.constant 0 : i32
    %c0_i32_1 = arith.constant 0 : i32
    return %c0_i32, %c0_i32_0 : i32, i32
  }
  func.func @transform_6(%arg0: i32) -> (i32, i32) {
    %c0_i32 = arith.constant 0 : i32
    %c0_i32_0 = arith.constant 0 : i32
    %c0_i32_1 = arith.constant 0 : i32
    return %c0_i32, %c0_i32_0 : i32, i32
  }
  func.func @transform_7(%arg0: i32) -> (i32, i32) {
    %c0_i32 = arith.constant 0 : i32
    %c0_i32_0 = arith.constant 0 : i32
    %c0_i32_1 = arith.constant 0 : i32
    return %c0_i32, %c0_i32_0 : i32, i32
  }
  func.func @transform_8(%arg0: i32) -> (i32, i32) {
    %c0_i32 = arith.constant 0 : i32
    %c0_i32_0 = arith.constant 0 : i32
    %c0_i32_1 = arith.constant 0 : i32
    return %c0_i32, %c0_i32_0 : i32, i32
  }
  func.func @transform_9(%arg0: i32) -> (i32, i32) {
    %c0_i32 = arith.constant 0 : i32
    %c0_i32_0 = arith.constant 0 : i32
    %c0_i32_1 = arith.constant 0 : i32
    return %c0_i32, %c0_i32_0 : i32, i32
  }
  func.func @transform_10(%arg0: i32) -> (i32, i32, i32) {
    %c0_i32 = arith.constant 0 : i32
    %c0_i32_0 = arith.constant 0 : i32
    %c0_i32_1 = arith.constant 0 : i32
    return %arg0, %c0_i32, %c0_i32_0 : i32, i32, i32
  }
}

</mosaic_0001>

<llo_original>
// kernel: tpu_custom_call.1
$region0: #{tpu_custom_call.1}
  #allocation0 [shape = 'u32[]', space=smem, size = 0x4, offset = 0x4, fixed_abs, tag = 'smem constant byte address 0x4 - core index']
  #allocation1 [shape = 'u32[72,128]{1,0:T(1,128)}', space=vmem, size = 0x9000, scoped, tag = 'internal scratch']
  #allocation2 [shape = 'f32[4,16,22]{2,1,0:T(8,128)}', space=vmem, size = 0x8000, scoped, tag = 'scratch operand']
  #allocation3 [shape = 'f32[4,16,16]{2,1,0:T(8,128)}', space=vmem, size = 0x8000, scoped, tag = 'scratch operand']
  %s0 = inlined_call_operand.hbm [shape: f32[8,16,16], index: 0, kind: input, shape index: {}]
  %s1 = inlined_call_operand.vmem [shape: f32[16,7], index: 1, kind: input, shape index: {}]
  %s2 = inlined_call_operand.vmem [shape: f32[16,1], index: 2, kind: input, shape index: {}]
  %s3 = inlined_call_operand.vmem [shape: f32[16,64], index: 3, kind: input, shape index: {}]
  %s4 = inlined_call_operand.vmem [shape: f32[1,64], index: 4, kind: input, shape index: {}]
  %s5 = inlined_call_operand.vmem [shape: f32[1,64], index: 5, kind: input, shape index: {}]
  %s6 = inlined_call_operand.vmem [shape: f32[1,64], index: 6, kind: input, shape index: {}]
  %s7 = inlined_call_operand.vmem [shape: f32[64,16], index: 7, kind: input, shape index: {}]
  %s8 = inlined_call_operand.vmem [shape: f32[1,16], index: 8, kind: input, shape index: {}]
  %s9 = inlined_call_operand.vmem [shape: f32[16,1], index: 9, kind: input, shape index: {}]
  %s10 = inlined_call_operand.hbm [shape: f32[8,16,16], index: 10, kind: output, shape index: {}]
  %s11 = sld [smem:[#allocation0]]
  $region77: #{tpu_custom_call.1} parent=0
    _
  %s13 = ssub.s32 1, %s11
  %s14 = scalar_select 0, %s13, %s11
  $region1: #{tpu_custom_call.1} parent=0
    #allocation4 [shape = 'u8[65536]{0}', space=vmem, size = 0x10000, scoped, tag = 'input window, operand 0']
    #allocation5 [shape = 's32[2]{0}', space=sflag, size = 0x8, scoped, tag = 'scoped memory for tpu_custom_call.1']
    #allocation6 [shape = 's32[2]{0}', space=sflag, size = 0x8, scoped, tag = 'scoped memory for tpu_custom_call.1']
    #allocation7 [shape = 'u8[65536]{0}', space=vmem, size = 0x10000, scoped, tag = 'output window, operand 0']
    %15 = vsyncpa [#allocation5], 0
    %s16 = scalar_lea.sflag [#allocation5], 1
    %17 = vsyncpa %s16, 0
    %18 = vsyncpa [#allocation6], 0
    %s19 = scalar_lea.sflag [#allocation6], 1
    %20 = vsyncpa %s19, 0
    loop: start=0, step=1, limit=4
    $region2: #{tpu_custom_call.1} parent=1 // loop_pre_header
      _
    $region3: #{tpu_custom_call.1} parent=1 // loop_header
      %s22 = sphi 0, %s26
      %p23 = scmp.ge.s32.totalorder %s22, 4
      %s32 = sphi 0, %s34
      %s35 = sphi 0, %s32
      %s36 = sphi 0, %s35
      %s52 = sphi 0, %s36
      %s56 = sphi 0, %s56
      %s58 = sphi 0, %s56
      %s59 = sphi 0, %s58
      %s73 = sphi 0, %s59
      %s77 = sphi 0, %s77
      %s79 = sphi 0, %s77
      %s80 = sphi 0, %s79
      %s94 = sphi 0, %s80
      %s98 = sphi 0, %s98
      %s100 = sphi 0, %s98
      %s101 = sphi 0, %s100
      %s115 = sphi 0, %s101
      %s119 = sphi 0, %s119
      %s121 = sphi 0, %s119
      %s122 = sphi 0, %s121
      %s136 = sphi 0, %s122
      %s140 = sphi 0, %s140
      %s142 = sphi 0, %s140
      %s143 = sphi 0, %s142
      %s157 = sphi 0, %s143
      %s161 = sphi 0, %s161
      %s163 = sphi 0, %s161
      %s164 = sphi 0, %s163
      %s178 = sphi 0, %s164
      %s182 = sphi 0, %s182
      %s184 = sphi 0, %s182
      %s185 = sphi 0, %s184
      %s199 = sphi 0, %s185
      %s203 = sphi 0, %s203
      %s205 = sphi 0, %s203
      %s206 = sphi 0, %s205
      %s220 = sphi 0, %s206
      %s224 = sphi 0, %s224
      %s226 = sphi 0, %s224
      %s227 = sphi 0, %s226
      %s241 = sphi 0, %s227
      %s247 = sphi 0, %s249
      %s250 = sphi 0, %s247
      %s251 = sphi 0, %s250
      %s267 = sphi 0, %s251
    $region4: #{tpu_custom_call.1} parent=1 // loop_header_branch
      %25 = sbr.rel (%p23) target = $region8
    $region5: #{tpu_custom_call.1} parent=1 // loop_body
      %s27 = ssub.s32 %s22, 1
      %s28 = ssub.s32 %s22, 2
      %s29 = sadd.s32 %s22, 1
      %s30 = ssub.s32 %s22, %s29
      %p31 = scmp.eq.s32.totalorder %s30, 0
      %s33 = sadd.s32 %s32, 1
      %s34 = scalar_select %p31, %s32, %s33
      %p37 = pneg %p31
      %p38 = scmp.eq.s32.totalorder %s22, 1
      %p39 = por %p37, %p38
      %p40 = scmp.ne.s32.totalorder %s32, %s35
      %p41 = scmp.eq.s32.totalorder %s22, 0
      %p42 = por %p40, %p41
      %p43 = scmp.ne.s32.totalorder %s32, %s35
      %p44 = scmp.eq.s32.totalorder %s27, 1
      %p45 = por %p43, %p44
      %p46 = scmp.ne.s32.totalorder %s35, %s36
      %p47 = scmp.eq.s32.totalorder %s27, 0
      %p48 = por %p46, %p47
      %p49 = scmp.ne.s32.totalorder %s35, %s36
      %p50 = scmp.eq.s32.totalorder %s28, 1
      %p51 = por %p49, %p50
      %p53 = scmp.ne.s32.totalorder %s36, %s52
      %p54 = scmp.eq.s32.totalorder %s28, 0
      %p55 = por %p53, %p54
      %s57 = sadd.s32 %s56, 1
      %p60 = scmp.eq.s32.totalorder %s22, 1
      %p61 = scmp.ne.s32.totalorder %s56, %s58
      %p62 = scmp.eq.s32.totalorder %s22, 0
      %p63 = por %p61, %p62
      %p64 = scmp.ne.s32.totalorder %s56, %s58
      %p65 = scmp.eq.s32.totalorder %s27, 1
      %p66 = por %p64, %p65
      %p67 = scmp.ne.s32.totalorder %s58, %s59
      %p68 = scmp.eq.s32.totalorder %s27, 0
      %p69 = por %p67, %p68
      %p70 = scmp.ne.s32.totalorder %s58, %s59
      %p71 = scmp.eq.s32.totalorder %s28, 1
      %p72 = por %p70, %p71
      %p74 = scmp.ne.s32.totalorder %s59, %s73
      %p75 = scmp.eq.s32.totalorder %s28, 0
      %p76 = por %p74, %p75
      %s78 = sadd.s32 %s77, 1
      %p81 = scmp.eq.s32.totalorder %s22, 1
      %p82 = scmp.ne.s32.totalorder %s77, %s79
      %p83 = scmp.eq.s32.totalorder %s22, 0
      %p84 = por %p82, %p83
      %p85 = scmp.ne.s32.totalorder %s77, %s79
      %p86 = scmp.eq.s32.totalorder %s27, 1
      %p87 = por %p85, %p86
      %p88 = scmp.ne.s32.totalorder %s79, %s80
      %p89 = scmp.eq.s32.totalorder %s27, 0
      %p90 = por %p88, %p89
      %p91 = scmp.ne.s32.totalorder %s79, %s80
      %p92 = scmp.eq.s32.totalorder %s28, 1
      %p93 = por %p91, %p92
      %p95 = scmp.ne.s32.totalorder %s80, %s94
      %p96 = scmp.eq.s32.totalorder %s28, 0
      %p97 = por %p95, %p96
      %s99 = sadd.s32 %s98, 1
      %p102 = scmp.eq.s32.totalorder %s22, 1
      %p103 = scmp.ne.s32.totalorder %s98, %s100
      %p104 = scmp.eq.s32.totalorder %s22, 0
      %p105 = por %p103, %p104
      %p106 = scmp.ne.s32.totalorder %s98, %s100
      %p107 = scmp.eq.s32.totalorder %s27, 1
      %p108 = por %p106, %p107
      %p109 = scmp.ne.s32.totalorder %s100, %s101
      %p110 = scmp.eq.s32.totalorder %s27, 0
      %p111 = por %p109, %p110
      %p112 = scmp.ne.s32.totalorder %s100, %s101
      %p113 = scmp.eq.s32.totalorder %s28, 1
      %p114 = por %p112, %p113
      %p116 = scmp.ne.s32.totalorder %s101, %s115
      %p117 = scmp.eq.s32.totalorder %s28, 0
      %p118 = por %p116, %p117
      %s120 = sadd.s32 %s119, 1
      %p123 = scmp.eq.s32.totalorder %s22, 1
      %p124 = scmp.ne.s32.totalorder %s119, %s121
      %p125 = scmp.eq.s32.totalorder %s22, 0
      %p126 = por %p124, %p125
      %p127 = scmp.ne.s32.totalorder %s119, %s121
      %p128 = scmp.eq.s32.totalorder %s27, 1
      %p129 = por %p127, %p128
      %p130 = scmp.ne.s32.totalorder %s121, %s122
      %p131 = scmp.eq.s32.totalorder %s27, 0
      %p132 = por %p130, %p131
      %p133 = scmp.ne.s32.totalorder %s121, %s122
      %p134 = scmp.eq.s32.totalorder %s28, 1
      %p135 = por %p133, %p134
      %p137 = scmp.ne.s32.totalorder %s122, %s136
      %p138 = scmp.eq.s32.totalorder %s28, 0
      %p139 = por %p137, %p138
      %s141 = sadd.s32 %s140, 1
      %p144 = scmp.eq.s32.totalorder %s22, 1
      %p145 = scmp.ne.s32.totalorder %s140, %s142
      %p146 = scmp.eq.s32.totalorder %s22, 0
      %p147 = por %p145, %p146
      %p148 = scmp.ne.s32.totalorder %s140, %s142
      %p149 = scmp.eq.s32.totalorder %s27, 1
      %p150 = por %p148, %p149
      %p151 = scmp.ne.s32.totalorder %s142, %s143
      %p152 = scmp.eq.s32.totalorder %s27, 0
      %p153 = por %p151, %p152
      %p154 = scmp.ne.s32.totalorder %s142, %s143
      %p155 = scmp.eq.s32.totalorder %s28, 1
      %p156 = por %p154, %p155
      %p158 = scmp.ne.s32.totalorder %s143, %s157
      %p159 = scmp.eq.s32.totalorder %s28, 0
      %p160 = por %p158, %p159
      %s162 = sadd.s32 %s161, 1
      %p165 = scmp.eq.s32.totalorder %s22, 1
      %p166 = scmp.ne.s32.totalorder %s161, %s163
      %p167 = scmp.eq.s32.totalorder %s22, 0
      %p168 = por %p166, %p167
      %p169 = scmp.ne.s32.totalorder %s161, %s163
      %p170 = scmp.eq.s32.totalorder %s27, 1
      %p171 = por %p169, %p170
      %p172 = scmp.ne.s32.totalorder %s163, %s164
      %p173 = scmp.eq.s32.totalorder %s27, 0
      %p174 = por %p172, %p173
      %p175 = scmp.ne.s32.totalorder %s163, %s164
      %p176 = scmp.eq.s32.totalorder %s28, 1
      %p177 = por %p175, %p176
      %p179 = scmp.ne.s32.totalorder %s164, %s178
      %p180 = scmp.eq.s32.totalorder %s28, 0
      %p181 = por %p179, %p180
      %s183 = sadd.s32 %s182, 1
      %p186 = scmp.eq.s32.totalorder %s22, 1
      %p187 = scmp.ne.s32.totalorder %s182, %s184
      %p188 = scmp.eq.s32.totalorder %s22, 0
      %p189 = por %p187, %p188
      %p190 = scmp.ne.s32.totalorder %s182, %s184
      %p191 = scmp.eq.s32.totalorder %s27, 1
      %p192 = por %p190, %p191
      %p193 = scmp.ne.s32.totalorder %s184, %s185
      %p194 = scmp.eq.s32.totalorder %s27, 0
      %p195 = por %p193, %p194
      %p196 = scmp.ne.s32.totalorder %s184, %s185
      %p197 = scmp.eq.s32.totalorder %s28, 1
      %p198 = por %p196, %p197
      %p200 = scmp.ne.s32.totalorder %s185, %s199
      %p201 = scmp.eq.s32.totalorder %s28, 0
      %p202 = por %p200, %p201
      %s204 = sadd.s32 %s203, 1
      %p207 = scmp.eq.s32.totalorder %s22, 1
      %p208 = scmp.ne.s32.totalorder %s203, %s205
      %p209 = scmp.eq.s32.totalorder %s22, 0
      %p210 = por %p208, %p209
      %p211 = scmp.ne.s32.totalorder %s203, %s205
      %p212 = scmp.eq.s32.totalorder %s27, 1
      %p213 = por %p211, %p212
      %p214 = scmp.ne.s32.totalorder %s205, %s206
      %p215 = scmp.eq.s32.totalorder %s27, 0
      %p216 = por %p214, %p215
      %p217 = scmp.ne.s32.totalorder %s205, %s206
      %p218 = scmp.eq.s32.totalorder %s28, 1
      %p219 = por %p217, %p218
      %p221 = scmp.ne.s32.totalorder %s206, %s220
      %p222 = scmp.eq.s32.totalorder %s28, 0
      %p223 = por %p221, %p222
      %s225 = sadd.s32 %s224, 1
      %p228 = scmp.eq.s32.totalorder %s22, 1
      %p229 = scmp.ne.s32.totalorder %s224, %s226
      %p230 = scmp.eq.s32.totalorder %s22, 0
      %p231 = por %p229, %p230
      %p232 = scmp.ne.s32.totalorder %s224, %s226
      %p233 = scmp.eq.s32.totalorder %s27, 1
      %p234 = por %p232, %p233
      %p235 = scmp.ne.s32.totalorder %s226, %s227
      %p236 = scmp.eq.s32.totalorder %s27, 0
      %p237 = por %p235, %p236
      %p238 = scmp.ne.s32.totalorder %s226, %s227
      %p239 = scmp.eq.s32.totalorder %s28, 1
      %p240 = por %p238, %p239
      %p242 = scmp.ne.s32.totalorder %s227, %s241
      %p243 = scmp.eq.s32.totalorder %s28, 0
      %p244 = por %p242, %p243
      %s245 = ssub.s32 %s22, %s29
      %p246 = scmp.eq.s32.totalorder %s245, 0
      %s248 = sadd.s32 %s247, 1
      %s249 = scalar_select %p246, %s247, %s248
      %p252 = pneg %p246
      %p253 = scmp.eq.s32.totalorder %s22, 1
      %p254 = por %p252, %p253
      %p255 = scmp.ne.s32.totalorder %s247, %s250
      %p256 = scmp.eq.s32.totalorder %s22, 0
      %p257 = por %p255, %p256
      %p258 = scmp.ne.s32.totalorder %s247, %s250
      %p259 = scmp.eq.s32.totalorder %s27, 1
      %p260 = por %p258, %p259
      %p261 = scmp.ne.s32.totalorder %s250, %s251
      %p262 = scmp.eq.s32.totalorder %s27, 0
      %p263 = por %p261, %p262
      %p264 = scmp.ne.s32.totalorder %s250, %s251
      %p265 = scmp.eq.s32.totalorder %s28, 1
      %p266 = por %p264, %p265
      %p268 = scmp.ne.s32.totalorder %s251, %s267
      %p269 = scmp.eq.s32.totalorder %s28, 0
      %p270 = por %p268, %p269
      %p271 = scmp.le.s32.totalorder 1, %s22
      %p272 = scmp.lt.s32.totalorder %s22, 3
      %p273 = pnand %p271, %p272
      %p274 = pneg %p273
      // Predicated region
      $region9: #{tpu_custom_call.1} parent=5 // pred_check
        _
      $region10: #{tpu_custom_call.1} parent=5 // pred_check_branch
        %276 = sbr.rel (%p273) target = $region12
      $region11: #{tpu_custom_call.1} parent=5 // pred_region
        %s277 = ssub.s32 %s22, 1
        // Predicated region
        $region13: #{tpu_custom_call.1} parent=11 // pred_check
          %p278 = pneg %p69
        $region14: #{tpu_custom_call.1} parent=11 // pred_check_branch
          %280 = sbr.rel (%p278) target = $region16
        $region15: #{tpu_custom_call.1} parent=11 // pred_region
          _
        $region16: #{tpu_custom_call.1} parent=11 // pred_fallthru
          _
        // Predicated region
        $region17: #{tpu_custom_call.1} parent=11 // pred_check
          %p281 = pneg %p90
        $region18: #{tpu_custom_call.1} parent=11 // pred_check_branch
          %283 = sbr.rel (%p281) target = $region20
        $region19: #{tpu_custom_call.1} parent=11 // pred_region
          _
        $region20: #{tpu_custom_call.1} parent=11 // pred_fallthru
          _
        // Predicated region
        $region21: #{tpu_custom_call.1} parent=11 // pred_check
          %p284 = pneg %p111
        $region22: #{tpu_custom_call.1} parent=11 // pred_check_branch
          %286 = sbr.rel (%p284) target = $region24
        $region23: #{tpu_custom_call.1} parent=11 // pred_region
          _
        $region24: #{tpu_custom_call.1} parent=11 // pred_fallthru
          _
        // Predicated region
        $region25: #{tpu_custom_call.1} parent=11 // pred_check
          %p287 = pneg %p132
        $region26: #{tpu_custom_call.1} parent=11 // pred_check_branch
          %289 = sbr.rel (%p287) target = $region28
        $region27: #{tpu_custom_call.1} parent=11 // pred_region
          _
        $region28: #{tpu_custom_call.1} parent=11 // pred_fallthru
          _
        // Predicated region
        $region29: #{tpu_custom_call.1} parent=11 // pred_check
          %p290 = pneg %p153
        $region30: #{tpu_custom_call.1} parent=11 // pred_check_branch
          %292 = sbr.rel (%p290) target = $region32
        $region31: #{tpu_custom_call.1} parent=11 // pred_region
          _
        $region32: #{tpu_custom_call.1} parent=11 // pred_fallthru
          _
        // Predicated region
        $region33: #{tpu_custom_call.1} parent=11 // pred_check
          %p293 = pneg %p174
        $region34: #{tpu_custom_call.1} parent=11 // pred_check_branch
          %295 = sbr.rel (%p293) target = $region36
        $region35: #{tpu_custom_call.1} parent=11 // pred_region
          _
        $region36: #{tpu_custom_call.1} parent=11 // pred_fallthru
          _
        // Predicated region
        $region37: #{tpu_custom_call.1} parent=11 // pred_check
          %p296 = pneg %p195
        $region38: #{tpu_custom_call.1} parent=11 // pred_check_branch
          %298 = sbr.rel (%p296) target = $region40
        $region39: #{tpu_custom_call.1} parent=11 // pred_region
          _
        $region40: #{tpu_custom_call.1} parent=11 // pred_fallthru
          _
        // Predicated region
        $region41: #{tpu_custom_call.1} parent=11 // pred_check
          %p299 = pneg %p216
        $region42: #{tpu_custom_call.1} parent=11 // pred_check_branch
          %301 = sbr.rel (%p299) target = $region44
        $region43: #{tpu_custom_call.1} parent=11 // pred_region
          _
        $region44: #{tpu_custom_call.1} parent=11 // pred_fallthru
          _
        // Predicated region
        $region45: #{tpu_custom_call.1} parent=11 // pred_check
          %p302 = pneg %p237
        $region46: #{tpu_custom_call.1} parent=11 // pred_check_branch
          %304 = sbr.rel (%p302) target = $region48
        $region47: #{tpu_custom_call.1} parent=11 // pred_region
          _
        $region48: #{tpu_custom_call.1} parent=11 // pred_fallthru
          _
      $region12: #{tpu_custom_call.1} parent=5 // pred_fallthru
        _
      %p305 = scmp.lt.s32.totalorder %s22, 2
      // Predicated region
      $region49: #{tpu_custom_call.1} parent=5 // pred_check
        %p306 = pneg %p305
      $region50: #{tpu_custom_call.1} parent=5 // pred_check_branch
        %308 = sbr.rel (%p306) target = $region52
      $region51: #{tpu_custom_call.1} parent=5 // pred_region
        // Predicated region
        $region53: #{tpu_custom_call.1} parent=51 // pred_check
          %p309 = pneg %p42
        $region54: #{tpu_custom_call.1} parent=51 // pred_check_branch
          %311 = sbr.rel (%p309) target = $region56
        $region55: #{tpu_custom_call.1} parent=51 // pred_region
          %s312 = sand.u32 %s32, 1
          %s313 = scalar_lea.sflag [#allocation5], %s312
          %s314 = sand.u32 %s32, 1
          %s315 = smul.addr %s314, 64
          %s316 = scalar_lea.vmem [#allocation4], %s315
          %s317 = smul.u32 4, %s22
          %319 = vsyncadd %s313, 0
          %s320 = smul.addr %s317, 2
          %s321 = smul.addr %s320, 8
          %s322 = scalar_lea.hbm %s0, %s321
          %s323 = sshll.u32 %s322, 4
          %s324 = int_to_ptr.hbm [resolvable:$true] %s323
          %s325 = sshll.u32 %s316, 4
          %s326 = int_to_ptr.vmem [resolvable:$true] %s325
          %331 = dma.hbm_to_vmem [thread:$0]  %s324, 1024, %s326, %s313, 128, 128, 8
        $region56: #{tpu_custom_call.1} parent=51 // pred_fallthru
          _
      $region52: #{tpu_custom_call.1} parent=5 // pred_fallthru
        _
      %p332 = scmp.le.s32.totalorder 1, %s22
      %p333 = scmp.lt.s32.totalorder %s22, 3
      %p334 = pnand %p332, %p333
      %p335 = pneg %p334
      // Predicated region
      $region57: #{tpu_custom_call.1} parent=5 // pred_check
        _
      $region58: #{tpu_custom_call.1} parent=5 // pred_check_branch
        %337 = sbr.rel (%p334) target = $region60
      $region59: #{tpu_custom_call.1} parent=5 // pred_region
        %s338 = ssub.s32 %s22, 1
        %s339 = sand.u32 %s35, 1
        %s340 = scalar_lea.sflag [#allocation5], %s339
        %s341 = sand.u32 %s35, 1
        %s342 = smul.addr %s341, 64
        %s343 = scalar_lea.vmem [#allocation4], %s342
        // Predicated region
        $region61: #{tpu_custom_call.1} parent=59 // pred_check
          %p344 = pneg %p48
        $region62: #{tpu_custom_call.1} parent=59 // pred_check_branch
          %346 = sbr.rel (%p344) target = $region64
        $region63: #{tpu_custom_call.1} parent=59 // pred_region
          %348 = dma.done %s340, 1024
        $region64: #{tpu_custom_call.1} parent=59 // pred_fallthru
          _
        %s349 = sand.u32 %s35, 1
        %s350 = scalar_lea.sflag [#allocation5], %s349
        %s351 = sand.u32 %s35, 1
        %s352 = smul.addr %s351, 64
        %s353 = scalar_lea.vmem [#allocation4], %s352
        %p354 = pneg %p48
        %p355 = pneg %p45
        %p356 = pneg %p69
        %p357 = pneg %p66
        %p358 = pneg %p90
        %p359 = pneg %p87
        %p360 = pneg %p111
        %p361 = pneg %p108
        %p362 = pneg %p132
        %p363 = pneg %p129
        %p364 = pneg %p153
        %p365 = pneg %p150
        %p366 = pneg %p174
        %p367 = pneg %p171
        %p368 = pneg %p195
        %p369 = pneg %p192
        %p370 = pneg %p216
        %p371 = pneg %p213
        %p372 = pneg %p237
        %p373 = pneg %p234
        %p374 = pneg %p263
        %p375 = pneg %p260
        %s376 = sand.u32 %s250, 1
        %s377 = scalar_lea.sflag [#allocation6], %s376
        %s378 = sand.u32 %s250, 1
        %s379 = smul.addr %s378, 64
        %s380 = scalar_lea.vmem [#allocation7], %s379
        %s381 = smul.u32 4, %s27
        %s382 = smul.u32 4, %s27
        %v383 = vld [vmem:[%s343] sm:$0xff]
        %v384 = vld [vmem:[%s343 + $0x8] sm:$0xff]
        %v385 = vld [vmem:[%s343 + $0x10] sm:$0xff]
        %v386 = vld [vmem:[%s343 + $0x18] sm:$0xff]
        %v387 = vld [vmem:[%s343 + $0x20] sm:$0xff]
        %v388 = vld [vmem:[%s343 + $0x28] sm:$0xff]
        %v389 = vld [vmem:[%s343 + $0x30] sm:$0xff]
        %v390 = vld [vmem:[%s343 + $0x38] sm:$0xff]
        %vm391 = vcmask 179200
        %392 = vst.msk [vmem:[#allocation2] sm:$0xff] %vm391, 0.0
        %393 = vst.msk [vmem:[#allocation2 + $0x8] sm:$0xff] %vm391, 0.0
        %394 = vst.msk [vmem:[#allocation2 + $0x10] sm:$0xff] %vm391, 0.0
        %395 = vst.msk [vmem:[#allocation2 + $0x18] sm:$0xff] %vm391, 0.0
        %396 = vst.msk [vmem:[#allocation2 + $0x20] sm:$0xff] %vm391, 0.0
        %397 = vst.msk [vmem:[#allocation2 + $0x28] sm:$0xff] %vm391, 0.0
        %398 = vst.msk [vmem:[#allocation2 + $0x30] sm:$0xff] %vm391, 0.0
        %399 = vst.msk [vmem:[#allocation2 + $0x38] sm:$0xff] %vm391, 0.0
        %408 = vrot.lane.b32.xlu0 %v383, 3
        %v409 = vpop.permute.xlu0 %408
        %410 = vrot.lane.b32.xlu0 %v384, 3
        %v411 = vpop.permute.xlu0 %410
        %412 = vrot.lane.b32.xlu0 %v385, 3
        %v413 = vpop.permute.xlu0 %412
        %414 = vrot.lane.b32.xlu0 %v386, 3
        %v415 = vpop.permute.xlu0 %414
        %416 = vrot.lane.b32.xlu0 %v387, 3
        %v417 = vpop.permute.xlu0 %416
        %418 = vrot.lane.b32.xlu0 %v388, 3
        %v419 = vpop.permute.xlu0 %418
        %420 = vrot.lane.b32.xlu0 %v389, 3
        %v421 = vpop.permute.xlu0 %420
        %422 = vrot.lane.b32.xlu0 %v390, 3
        %v423 = vpop.permute.xlu0 %422
        %vm432 = vcmask 154648
        %433 = vst.msk [vmem:[#allocation2] sm:$0xff] %vm432, %v409
        %434 = vst.msk [vmem:[#allocation2 + $0x8] sm:$0xff] %vm432, %v411
        %435 = vst.msk [vmem:[#allocation2 + $0x10] sm:$0xff] %vm432, %v413
        %436 = vst.msk [vmem:[#allocation2 + $0x18] sm:$0xff] %vm432, %v415
        %437 = vst.msk [vmem:[#allocation2 + $0x20] sm:$0xff] %vm432, %v417
        %438 = vst.msk [vmem:[#allocation2 + $0x28] sm:$0xff] %vm432, %v419
        %439 = vst.msk [vmem:[#allocation2 + $0x30] sm:$0xff] %vm432, %v421
        %440 = vst.msk [vmem:[#allocation2 + $0x38] sm:$0xff] %vm432, %v423
        %v441 = vld [vmem:[%s1] sm:$0xff]
        %v442 = vld [vmem:[%s1 + $0x8] sm:$0xff]
        %v443 = vld [vmem:[#allocation2] sm:$0xff]
        %v444 = vld [vmem:[#allocation2 + $0x8] sm:$0xff]
        %v445 = vld [vmem:[#allocation2 + $0x10] sm:$0xff]
        %v446 = vld [vmem:[#allocation2 + $0x18] sm:$0xff]
        %v447 = vld [vmem:[#allocation2 + $0x20] sm:$0xff]
        %v448 = vld [vmem:[#allocation2 + $0x28] sm:$0xff]
        %v449 = vld [vmem:[#allocation2 + $0x30] sm:$0xff]
        %v450 = vld [vmem:[#allocation2 + $0x38] sm:$0xff]
        %452 = vset.pattern.permute.xlu0 0
        %453 = vperm.xlu0 %452, %v441
        %v454 = vpop.permute.xlu0 %453
        %457 = vset.pattern.permute.xlu0 0
        %458 = vperm.xlu0 %457, %v442
        %v459 = vpop.permute.xlu0 %458
        %v461 = vmul.f32 %v454, %v443
        %v462 = vmul.f32 %v459, %v444
        %v463 = vmul.f32 %v454, %v445
        %v464 = vmul.f32 %v459, %v446
        %v465 = vmul.f32 %v454, %v447
        %v466 = vmul.f32 %v459, %v448
        %v467 = vmul.f32 %v454, %v449
        %v468 = vmul.f32 %v459, %v450
        %469 = vset.pattern.permute.xlu0 1
        %470 = vperm.xlu0 %469, %v441
        %v471 = vpop.permute.xlu0 %470
        %473 = vset.pattern.permute.xlu0 1
        %474 = vperm.xlu0 %473, %v442
        %v475 = vpop.permute.xlu0 %474
        %v477 = vmul.f32 %v471, %v443
        %v478 = vmul.f32 %v475, %v444
        %v479 = vmul.f32 %v471, %v445
        %v480 = vmul.f32 %v475, %v446
        %v481 = vmul.f32 %v471, %v447
        %v482 = vmul.f32 %v475, %v448
        %v483 = vmul.f32 %v471, %v449
        %v484 = vmul.f32 %v475, %v450
        %493 = vrot.lane.b32.xlu0 %v477, 127
        %v494 = vpop.permute.xlu0 %493
        %495 = vrot.lane.b32.xlu0 %v478, 127
        %v496 = vpop.permute.xlu0 %495
        %497 = vrot.lane.b32.xlu0 %v479, 127
        %v498 = vpop.permute.xlu0 %497
        %499 = vrot.lane.b32.xlu0 %v480, 127
        %v500 = vpop.permute.xlu0 %499
        %501 = vrot.lane.b32.xlu0 %v481, 127
        %v502 = vpop.permute.xlu0 %501
        %503 = vrot.lane.b32.xlu0 %v482, 127
        %v504 = vpop.permute.xlu0 %503
        %505 = vrot.lane.b32.xlu0 %v483, 127
        %v506 = vpop.permute.xlu0 %505
        %507 = vrot.lane.b32.xlu0 %v484, 127
        %v508 = vpop.permute.xlu0 %507
        %v517 = vadd.f32 %v461, %v494
        %v518 = vadd.f32 %v462, %v496
        %v519 = vadd.f32 %v463, %v498
        %v520 = vadd.f32 %v464, %v500
        %v521 = vadd.f32 %v465, %v502
        %v522 = vadd.f32 %v466, %v504
        %v523 = vadd.f32 %v467, %v506
        %v524 = vadd.f32 %v468, %v508
        %525 = vset.pattern.permute.xlu0 2
        %526 = vperm.xlu0 %525, %v441
        %v527 = vpop.permute.xlu0 %526
        %529 = vset.pattern.permute.xlu0 2
        %530 = vperm.xlu0 %529, %v442
        %v531 = vpop.permute.xlu0 %530
        %v533 = vmul.f32 %v527, %v443
        %v534 = vmul.f32 %v531, %v444
        %v535 = vmul.f32 %v527, %v445
        %v536 = vmul.f32 %v531, %v446
        %v537 = vmul.f32 %v527, %v447
        %v538 = vmul.f32 %v531, %v448
        %v539 = vmul.f32 %v527, %v449
        %v540 = vmul.f32 %v531, %v450
        %549 = vrot.lane.b32.xlu0 %v533, 126
        %v550 = vpop.permute.xlu0 %549
        %551 = vrot.lane.b32.xlu0 %v534, 126
        %v552 = vpop.permute.xlu0 %551
        %553 = vrot.lane.b32.xlu0 %v535, 126
        %v554 = vpop.permute.xlu0 %553
        %555 = vrot.lane.b32.xlu0 %v536, 126
        %v556 = vpop.permute.xlu0 %555
        %557 = vrot.lane.b32.xlu0 %v537, 126
        %v558 = vpop.permute.xlu0 %557
        %559 = vrot.lane.b32.xlu0 %v538, 126
        %v560 = vpop.permute.xlu0 %559
        %561 = vrot.lane.b32.xlu0 %v539, 126
        %v562 = vpop.permute.xlu0 %561
        %563 = vrot.lane.b32.xlu0 %v540, 126
        %v564 = vpop.permute.xlu0 %563
        %v573 = vadd.f32 %v517, %v550
        %v574 = vadd.f32 %v518, %v552
        %v575 = vadd.f32 %v519, %v554
        %v576 = vadd.f32 %v520, %v556
        %v577 = vadd.f32 %v521, %v558
        %v578 = vadd.f32 %v522, %v560
        %v579 = vadd.f32 %v523, %v562
        %v580 = vadd.f32 %v524, %v564
        %581 = vset.pattern.permute.xlu0 3
        %582 = vperm.xlu0 %581, %v441
        %v583 = vpop.permute.xlu0 %582
        %585 = vset.pattern.permute.xlu0 3
        %586 = vperm.xlu0 %585, %v442
        %v587 = vpop.permute.xlu0 %586
        %v589 = vmul.f32 %v583, %v443
        %v590 = vmul.f32 %v587, %v444
        %v591 = vmul.f32 %v583, %v445
        %v592 = vmul.f32 %v587, %v446
        %v593 = vmul.f32 %v583, %v447
        %v594 = vmul.f32 %v587, %v448
        %v595 = vmul.f32 %v583, %v449
        %v596 = vmul.f32 %v587, %v450
        %605 = vrot.lane.b32.xlu0 %v589, 125
        %v606 = vpop.permute.xlu0 %605
        %607 = vrot.lane.b32.xlu0 %v590, 125
        %v608 = vpop.permute.xlu0 %607
        %609 = vrot.lane.b32.xlu0 %v591, 125
        %v610 = vpop.permute.xlu0 %609
        %611 = vrot.lane.b32.xlu0 %v592, 125
        %v612 = vpop.permute.xlu0 %611
        %613 = vrot.lane.b32.xlu0 %v593, 125
        %v614 = vpop.permute.xlu0 %613
        %615 = vrot.lane.b32.xlu0 %v594, 125
        %v616 = vpop.permute.xlu0 %615
        %617 = vrot.lane.b32.xlu0 %v595, 125
        %v618 = vpop.permute.xlu0 %617
        %619 = vrot.lane.b32.xlu0 %v596, 125
        %v620 = vpop.permute.xlu0 %619
        %v629 = vadd.f32 %v573, %v606
        %v630 = vadd.f32 %v574, %v608
        %v631 = vadd.f32 %v575, %v610
        %v632 = vadd.f32 %v576, %v612
        %v633 = vadd.f32 %v577, %v614
        %v634 = vadd.f32 %v578, %v616
        %v635 = vadd.f32 %v579, %v618
        %v636 = vadd.f32 %v580, %v620
        %637 = vset.pattern.permute.xlu0 4
        %638 = vperm.xlu0 %637, %v441
        %v639 = vpop.permute.xlu0 %638
        %641 = vset.pattern.permute.xlu0 4
        %642 = vperm.xlu0 %641, %v442
        %v643 = vpop.permute.xlu0 %642
        %v645 = vmul.f32 %v639, %v443
        %v646 = vmul.f32 %v643, %v444
        %v647 = vmul.f32 %v639, %v445
        %v648 = vmul.f32 %v643, %v446
        %v649 = vmul.f32 %v639, %v447
        %v650 = vmul.f32 %v643, %v448
        %v651 = vmul.f32 %v639, %v449
        %v652 = vmul.f32 %v643, %v450
        %661 = vrot.lane.b32.xlu0 %v645, 124
        %v662 = vpop.permute.xlu0 %661
        %663 = vrot.lane.b32.xlu0 %v646, 124
        %v664 = vpop.permute.xlu0 %663
        %665 = vrot.lane.b32.xlu0 %v647, 124
        %v666 = vpop.permute.xlu0 %665
        %667 = vrot.lane.b32.xlu0 %v648, 124
        %v668 = vpop.permute.xlu0 %667
        %669 = vrot.lane.b32.xlu0 %v649, 124
        %v670 = vpop.permute.xlu0 %669
        %671 = vrot.lane.b32.xlu0 %v650, 124
        %v672 = vpop.permute.xlu0 %671
        %673 = vrot.lane.b32.xlu0 %v651, 124
        %v674 = vpop.permute.xlu0 %673
        %675 = vrot.lane.b32.xlu0 %v652, 124
        %v676 = vpop.permute.xlu0 %675
        %v685 = vadd.f32 %v629, %v662
        %v686 = vadd.f32 %v630, %v664
        %v687 = vadd.f32 %v631, %v666
        %v688 = vadd.f32 %v632, %v668
        %v689 = vadd.f32 %v633, %v670
        %v690 = vadd.f32 %v634, %v672
        %v691 = vadd.f32 %v635, %v674
        %v692 = vadd.f32 %v636, %v676
        %693 = vset.pattern.permute.xlu0 5
        %694 = vperm.xlu0 %693, %v441
        %v695 = vpop.permute.xlu0 %694
        %697 = vset.pattern.permute.xlu0 5
        %698 = vperm.xlu0 %697, %v442
        %v699 = vpop.permute.xlu0 %698
        %v701 = vmul.f32 %v695, %v443
        %v702 = vmul.f32 %v699, %v444
        %v703 = vmul.f32 %v695, %v445
        %v704 = vmul.f32 %v699, %v446
        %v705 = vmul.f32 %v695, %v447
        %v706 = vmul.f32 %v699, %v448
        %v707 = vmul.f32 %v695, %v449
        %v708 = vmul.f32 %v699, %v450
        %717 = vrot.lane.b32.xlu0 %v701, 123
        %v718 = vpop.permute.xlu0 %717
        %719 = vrot.lane.b32.xlu0 %v702, 123
        %v720 = vpop.permute.xlu0 %719
        %721 = vrot.lane.b32.xlu0 %v703, 123
        %v722 = vpop.permute.xlu0 %721
        %723 = vrot.lane.b32.xlu0 %v704, 123
        %v724 = vpop.permute.xlu0 %723
        %725 = vrot.lane.b32.xlu0 %v705, 123
        %v726 = vpop.permute.xlu0 %725
        %727 = vrot.lane.b32.xlu0 %v706, 123
        %v728 = vpop.permute.xlu0 %727
        %729 = vrot.lane.b32.xlu0 %v707, 123
        %v730 = vpop.permute.xlu0 %729
        %731 = vrot.lane.b32.xlu0 %v708, 123
        %v732 = vpop.permute.xlu0 %731
        %v741 = vadd.f32 %v685, %v718
        %v742 = vadd.f32 %v686, %v720
        %v743 = vadd.f32 %v687, %v722
        %v744 = vadd.f32 %v688, %v724
        %v745 = vadd.f32 %v689, %v726
        %v746 = vadd.f32 %v690, %v728
        %v747 = vadd.f32 %v691, %v730
        %v748 = vadd.f32 %v692, %v732
        %749 = vset.pattern.permute.xlu0 6
        %750 = vperm.xlu0 %749, %v441
        %v751 = vpop.permute.xlu0 %750
        %753 = vset.pattern.permute.xlu0 6
        %754 = vperm.xlu0 %753, %v442
        %v755 = vpop.permute.xlu0 %754
        %v757 = vmul.f32 %v751, %v443
        %v758 = vmul.f32 %v755, %v444
        %v759 = vmul.f32 %v751, %v445
        %v760 = vmul.f32 %v755, %v446
        %v761 = vmul.f32 %v751, %v447
        %v762 = vmul.f32 %v755, %v448
        %v763 = vmul.f32 %v751, %v449
        %v764 = vmul.f32 %v755, %v450
        %773 = vrot.lane.b32.xlu0 %v757, 122
        %v774 = vpop.permute.xlu0 %773
        %775 = vrot.lane.b32.xlu0 %v758, 122
        %v776 = vpop.permute.xlu0 %775
        %777 = vrot.lane.b32.xlu0 %v759, 122
        %v778 = vpop.permute.xlu0 %777
        %779 = vrot.lane.b32.xlu0 %v760, 122
        %v780 = vpop.permute.xlu0 %779
        %781 = vrot.lane.b32.xlu0 %v761, 122
        %v782 = vpop.permute.xlu0 %781
        %783 = vrot.lane.b32.xlu0 %v762, 122
        %v784 = vpop.permute.xlu0 %783
        %785 = vrot.lane.b32.xlu0 %v763, 122
        %v786 = vpop.permute.xlu0 %785
        %787 = vrot.lane.b32.xlu0 %v764, 122
        %v788 = vpop.permute.xlu0 %787
        %v797 = vadd.f32 %v741, %v774
        %v798 = vadd.f32 %v742, %v776
        %v799 = vadd.f32 %v743, %v778
        %v800 = vadd.f32 %v744, %v780
        %v801 = vadd.f32 %v745, %v782
        %v802 = vadd.f32 %v746, %v784
        %v803 = vadd.f32 %v747, %v786
        %v804 = vadd.f32 %v748, %v788
        %v805 = vld [vmem:[%s2] sm:$0xff]
        %v806 = vld [vmem:[%s2 + $0x8] sm:$0xff]
        %808 = vset.pattern.permute.xlu0 0
        %809 = vperm.xlu0 %808, %v805
        %v810 = vpop.permute.xlu0 %809
        %813 = vset.pattern.permute.xlu0 0
        %814 = vperm.xlu0 %813, %v806
        %v815 = vpop.permute.xlu0 %814
        %v817 = vadd.f32 %v797, %v810
        %v818 = vadd.f32 %v798, %v815
        %v819 = vadd.f32 %v799, %v810
        %v820 = vadd.f32 %v800, %v815
        %v821 = vadd.f32 %v801, %v810
        %v822 = vadd.f32 %v802, %v815
        %v823 = vadd.f32 %v803, %v810
        %v824 = vadd.f32 %v804, %v815
        %825 = vxpose.xlu0.b32.start [1/16] %v817, 128
        %826 = vxpose.xlu0.b32.cont [2/16] %v818, 128
        %827 = vxpose.xlu0.b32.cont [3/16] 0.0, 128
        %828 = vxpose.xlu0.b32.cont [4/16] 0.0, 128
        %829 = vxpose.xlu0.b32.cont [5/16] 0.0, 128
        %830 = vxpose.xlu0.b32.cont [6/16] 0.0, 128
        %831 = vxpose.xlu0.b32.cont [7/16] 0.0, 128
        %832 = vxpose.xlu0.b32.cont [8/16] 0.0, 128
        %833 = vxpose.xlu0.b32.cont [9/16] 0.0, 128
        %834 = vxpose.xlu0.b32.cont [10/16] 0.0, 128
        %835 = vxpose.xlu0.b32.cont [11/16] 0.0, 128
        %836 = vxpose.xlu0.b32.cont [12/16] 0.0, 128
        %837 = vxpose.xlu0.b32.cont [13/16] 0.0, 128
        %838 = vxpose.xlu0.b32.cont [14/16] 0.0, 128
        %839 = vxpose.xlu0.b32.cont [15/16] 0.0, 128
        %840 = vxpose.xlu0.b32.end [16/16] 0.0, 128
        %v841 = vpop.trf.xlu0
        %v842 = vpop.trf.xlu0
        %v843 = vpop.trf.xlu0
        %v844 = vpop.trf.xlu0
        %v845 = vpop.trf.xlu0
        %v846 = vpop.trf.xlu0
        %v847 = vpop.trf.xlu0
        %v848 = vpop.trf.xlu0
        %v849 = vpop.trf.xlu0
        %v850 = vpop.trf.xlu0
        %v851 = vpop.trf.xlu0
        %v852 = vpop.trf.xlu0
        %v853 = vpop.trf.xlu0
        %v854 = vpop.trf.xlu0
        %v855 = vpop.trf.xlu0
        %v856 = vpop.trf.xlu0
        %vm857 = vcmask 130048
        %858 = vst.msk [vmem:[#allocation3] sm:$0xff] %vm857, %v841
        %859 = vst.msk [vmem:[#allocation3 + $0x8] sm:$0xff] %vm857, %v842
        %860 = vxpose.xlu0.b32.start [1/16] %v819, 128
        %861 = vxpose.xlu0.b32.cont [2/16] %v820, 128
        %862 = vxpose.xlu0.b32.cont [3/16] 0.0, 128
        %863 = vxpose.xlu0.b32.cont [4/16] 0.0, 128
        %864 = vxpose.xlu0.b32.cont [5/16] 0.0, 128
        %865 = vxpose.xlu0.b32.cont [6/16] 0.0, 128
        %866 = vxpose.xlu0.b32.cont [7/16] 0.0, 128
        %867 = vxpose.xlu0.b32.cont [8/16] 0.0, 128
        %868 = vxpose.xlu0.b32.cont [9/16] 0.0, 128
        %869 = vxpose.xlu0.b32.cont [10/16] 0.0, 128
        %870 = vxpose.xlu0.b32.cont [11/16] 0.0, 128
        %871 = vxpose.xlu0.b32.cont [12/16] 0.0, 128
        %872 = vxpose.xlu0.b32.cont [13/16] 0.0, 128
        %873 = vxpose.xlu0.b32.cont [14/16] 0.0, 128
        %874 = vxpose.xlu0.b32.cont [15/16] 0.0, 128
        %875 = vxpose.xlu0.b32.end [16/16] 0.0, 128
        %v876 = vpop.trf.xlu0
        %v877 = vpop.trf.xlu0
        %v878 = vpop.trf.xlu0
        %v879 = vpop.trf.xlu0
        %v880 = vpop.trf.xlu0
        %v881 = vpop.trf.xlu0
        %v882 = vpop.trf.xlu0
        %v883 = vpop.trf.xlu0
        %v884 = vpop.trf.xlu0
        %v885 = vpop.trf.xlu0
        %v886 = vpop.trf.xlu0
        %v887 = vpop.trf.xlu0
        %v888 = vpop.trf.xlu0
        %v889 = vpop.trf.xlu0
        %v890 = vpop.trf.xlu0
        %v891 = vpop.trf.xlu0
        %s892 = scalar_lea.vmem [#allocation3], 16
        %893 = vst.msk [vmem:[%s892] sm:$0xff] %vm857, %v876
        %894 = vst.msk [vmem:[%s892 + $0x8] sm:$0xff] %vm857, %v877
        %895 = vxpose.xlu0.b32.start [1/16] %v821, 128
        %896 = vxpose.xlu0.b32.cont [2/16] %v822, 128
        %897 = vxpose.xlu0.b32.cont [3/16] 0.0, 128
        %898 = vxpose.xlu0.b32.cont [4/16] 0.0, 128
        %899 = vxpose.xlu0.b32.cont [5/16] 0.0, 128
        %900 = vxpose.xlu0.b32.cont [6/16] 0.0, 128
        %901 = vxpose.xlu0.b32.cont [7/16] 0.0, 128
        %902 = vxpose.xlu0.b32.cont [8/16] 0.0, 128
        %903 = vxpose.xlu0.b32.cont [9/16] 0.0, 128
        %904 = vxpose.xlu0.b32.cont [10/16] 0.0, 128
        %905 = vxpose.xlu0.b32.cont [11/16] 0.0, 128
        %906 = vxpose.xlu0.b32.cont [12/16] 0.0, 128
        %907 = vxpose.xlu0.b32.cont [13/16] 0.0, 128
        %908 = vxpose.xlu0.b32.cont [14/16] 0.0, 128
        %909 = vxpose.xlu0.b32.cont [15/16] 0.0, 128
        %910 = vxpose.xlu0.b32.end [16/16] 0.0, 128
        %v911 = vpop.trf.xlu0
        %v912 = vpop.trf.xlu0
        %v913 = vpop.trf.xlu0
        %v914 = vpop.trf.xlu0
        %v915 = vpop.trf.xlu0
        %v916 = vpop.trf.xlu0
        %v917 = vpop.trf.xlu0
        %v918 = vpop.trf.xlu0
        %v919 = vpop.trf.xlu0
        %v920 = vpop.trf.xlu0
        %v921 = vpop.trf.xlu0
        %v922 = vpop.trf.xlu0
        %v923 = vpop.trf.xlu0
        %v924 = vpop.trf.xlu0
        %v925 = vpop.trf.xlu0
        %v926 = vpop.trf.xlu0
        %s927 = scalar_lea.vmem [#allocation3], 32
        %928 = vst.msk [vmem:[%s927] sm:$0xff] %vm857, %v911
        %929 = vst.msk [vmem:[%s927 + $0x8] sm:$0xff] %vm857, %v912
        %930 = vxpose.xlu0.b32.start [1/16] %v823, 128
        %931 = vxpose.xlu0.b32.cont [2/16] %v824, 128
        %932 = vxpose.xlu0.b32.cont [3/16] 0.0, 128
        %933 = vxpose.xlu0.b32.cont [4/16] 0.0, 128
        %934 = vxpose.xlu0.b32.cont [5/16] 0.0, 128
        %935 = vxpose.xlu0.b32.cont [6/16] 0.0, 128
        %936 = vxpose.xlu0.b32.cont [7/16] 0.0, 128
        %937 = vxpose.xlu0.b32.cont [8/16] 0.0, 128
        %938 = vxpose.xlu0.b32.cont [9/16] 0.0, 128
        %939 = vxpose.xlu0.b32.cont [10/16] 0.0, 128
        %940 = vxpose.xlu0.b32.cont [11/16] 0.0, 128
        %941 = vxpose.xlu0.b32.cont [12/16] 0.0, 128
        %942 = vxpose.xlu0.b32.cont [13/16] 0.0, 128
        %943 = vxpose.xlu0.b32.cont [14/16] 0.0, 128
        %944 = vxpose.xlu0.b32.cont [15/16] 0.0, 128
        %945 = vxpose.xlu0.b32.end [16/16] 0.0, 128
        %v946 = vpop.trf.xlu0
        %v947 = vpop.trf.xlu0
        %v948 = vpop.trf.xlu0
        %v949 = vpop.trf.xlu0
        %v950 = vpop.trf.xlu0
        %v951 = vpop.trf.xlu0
        %v952 = vpop.trf.xlu0
        %v953 = vpop.trf.xlu0
        %v954 = vpop.trf.xlu0
        %v955 = vpop.trf.xlu0
        %v956 = vpop.trf.xlu0
        %v957 = vpop.trf.xlu0
        %v958 = vpop.trf.xlu0
        %v959 = vpop.trf.xlu0
        %v960 = vpop.trf.xlu0
        %v961 = vpop.trf.xlu0
        %s962 = scalar_lea.vmem [#allocation3], 48
        %963 = vst.msk [vmem:[%s962] sm:$0xff] %vm857, %v946
        %964 = vst.msk [vmem:[%s962 + $0x8] sm:$0xff] %vm857, %v947
        %v965 = vld [vmem:[#allocation3] sm:$0xff]
        %v966 = vld [vmem:[#allocation3 + $0x8] sm:$0xff]
        %v967 = vld [vmem:[#allocation3 + $0x10] sm:$0xff]
        %v968 = vld [vmem:[#allocation3 + $0x18] sm:$0xff]
        %v969 = vld [vmem:[#allocation3 + $0x20] sm:$0xff]
        %v970 = vld [vmem:[#allocation3 + $0x28] sm:$0xff]
        %v971 = vld [vmem:[#allocation3 + $0x30] sm:$0xff]
        %v972 = vld [vmem:[#allocation3 + $0x38] sm:$0xff]
        %v973 = vsel %vm857, %v965, 0.0
        %974 = vadd.xlane.f32.xlu0 %v973
        %v975 = vpop.xlane.xlu0 %974
        %v976 = vsel %vm857, %v966, 0.0
        %977 = vadd.xlane.f32.xlu0 %v976
        %v978 = vpop.xlane.xlu0 %977
        %v979 = vsel %vm857, %v967, 0.0
        %980 = vadd.xlane.f32.xlu0 %v979
        %v981 = vpop.xlane.xlu0 %980
        %v982 = vsel %vm857, %v968, 0.0
        %983 = vadd.xlane.f32.xlu0 %v982
        %v984 = vpop.xlane.xlu0 %983
        %v985 = vsel %vm857, %v969, 0.0
        %986 = vadd.xlane.f32.xlu0 %v985
        %v987 = vpop.xlane.xlu0 %986
        %v988 = vsel %vm857, %v970, 0.0
        %989 = vadd.xlane.f32.xlu0 %v988
        %v990 = vpop.xlane.xlu0 %989
        %v991 = vsel %vm857, %v971, 0.0
        %992 = vadd.xlane.f32.xlu0 %v991
        %v993 = vpop.xlane.xlu0 %992
        %v994 = vsel %vm857, %v972, 0.0
        %995 = vadd.xlane.f32.xlu0 %v994
        %v996 = vpop.xlane.xlu0 %995
        %v997 = vrcp.pop 16.0
        %v998 = vmul.f32 16.0, %v997
        %v999 = vsub.f32 1.0, %v998
        %v1000 = vmul.f32 %v997, %v999
        %v1001 = vadd.f32 %v997, %v1000
        %vm1002 = vweird.f32 %v997
        %v1003 = vsel %vm1002, %v997, %v1001
        %v1004 = vmul.f32 %v975, %v1003
        %v1005 = vmul.f32 %v978, %v1003
        %v1006 = vmul.f32 %v981, %v1003
        %v1007 = vmul.f32 %v984, %v1003
        %v1008 = vmul.f32 %v987, %v1003
        %v1009 = vmul.f32 %v990, %v1003
        %v1010 = vmul.f32 %v993, %v1003
        %v1011 = vmul.f32 %v996, %v1003
        %v1012 = vsub.f32 %v965, %v1004
        %v1013 = vsub.f32 %v966, %v1005
        %v1014 = vsub.f32 %v967, %v1006
        %v1015 = vsub.f32 %v968, %v1007
        %v1016 = vsub.f32 %v969, %v1008
        %v1017 = vsub.f32 %v970, %v1009
        %v1018 = vsub.f32 %v971, %v1010
        %v1019 = vsub.f32 %v972, %v1011
        %v1020 = vmul.f32 %v1012, %v1012
        %v1021 = vmul.f32 %v1013, %v1013
        %v1022 = vmul.f32 %v1014, %v1014
        %v1023 = vmul.f32 %v1015, %v1015
        %v1024 = vmul.f32 %v1016, %v1016
        %v1025 = vmul.f32 %v1017, %v1017
        %v1026 = vmul.f32 %v1018, %v1018
        %v1027 = vmul.f32 %v1019, %v1019
        %v1028 = vsel %vm857, %v1020, 0.0
        %1029 = vadd.xlane.f32.xlu0 %v1028
        %v1030 = vpop.xlane.xlu0 %1029
        %v1031 = vsel %vm857, %v1021, 0.0
        %1032 = vadd.xlane.f32.xlu0 %v1031
        %v1033 = vpop.xlane.xlu0 %1032
        %v1034 = vsel %vm857, %v1022, 0.0
        %1035 = vadd.xlane.f32.xlu0 %v1034
        %v1036 = vpop.xlane.xlu0 %1035
        %v1037 = vsel %vm857, %v1023, 0.0
        %1038 = vadd.xlane.f32.xlu0 %v1037
        %v1039 = vpop.xlane.xlu0 %1038
        %v1040 = vsel %vm857, %v1024, 0.0
        %1041 = vadd.xlane.f32.xlu0 %v1040
        %v1042 = vpop.xlane.xlu0 %1041
        %v1043 = vsel %vm857, %v1025, 0.0
        %1044 = vadd.xlane.f32.xlu0 %v1043
        %v1045 = vpop.xlane.xlu0 %1044
        %v1046 = vsel %vm857, %v1026, 0.0
        %1047 = vadd.xlane.f32.xlu0 %v1046
        %v1048 = vpop.xlane.xlu0 %1047
        %v1049 = vsel %vm857, %v1027, 0.0
        %1050 = vadd.xlane.f32.xlu0 %v1049
        %v1051 = vpop.xlane.xlu0 %1050
        %v1052 = vmul.f32 %v1030, %v1003
        %v1053 = vmul.f32 %v1033, %v1003
        %v1054 = vmul.f32 %v1036, %v1003
        %v1055 = vmul.f32 %v1039, %v1003
        %v1056 = vmul.f32 %v1042, %v1003
        %v1057 = vmul.f32 %v1045, %v1003
        %v1058 = vmul.f32 %v1048, %v1003
        %v1059 = vmul.f32 %v1051, %v1003
        %v1060 = vadd.f32 %v1052, 1e-06
        %v1061 = vadd.f32 %v1053, 1e-06
        %v1062 = vadd.f32 %v1054, 1e-06
        %v1063 = vadd.f32 %v1055, 1e-06
        %v1064 = vadd.f32 %v1056, 1e-06
        %v1065 = vadd.f32 %v1057, 1e-06
        %v1066 = vadd.f32 %v1058, 1e-06
        %v1067 = vadd.f32 %v1059, 1e-06
        %v1068 = vrsqrt.pop %v1060
        %v1069 = vmul.f32 %v1068, %v1060
        %v1070 = vmul.f32 %v1069, %v1068
        %v1071 = vmul.f32 0.5, %v1070
        %v1072 = vsub.f32 1.5, %v1071
        %v1073 = vmul.f32 %v1068, %v1072
        %vm1074 = vweird.f32 %v1060
        %vm1075 = vweird.f32 %v1068
        %vm1076 = vmor %vm1074, %vm1075
        %v1077 = vsel %vm1076, %v1068, %v1073
        %v1078 = vrsqrt.pop %v1061
        %v1079 = vmul.f32 %v1078, %v1061
        %v1080 = vmul.f32 %v1079, %v1078
        %v1081 = vmul.f32 0.5, %v1080
        %v1082 = vsub.f32 1.5, %v1081
        %v1083 = vmul.f32 %v1078, %v1082
        %vm1084 = vweird.f32 %v1061
        %vm1085 = vweird.f32 %v1078
        %vm1086 = vmor %vm1084, %vm1085
        %v1087 = vsel %vm1086, %v1078, %v1083
        %v1088 = vrsqrt.pop %v1062
        %v1089 = vmul.f32 %v1088, %v1062
        %v1090 = vmul.f32 %v1089, %v1088
        %v1091 = vmul.f32 0.5, %v1090
        %v1092 = vsub.f32 1.5, %v1091
        %v1093 = vmul.f32 %v1088, %v1092
        %vm1094 = vweird.f32 %v1062
        %vm1095 = vweird.f32 %v1088
        %vm1096 = vmor %vm1094, %vm1095
        %v1097 = vsel %vm1096, %v1088, %v1093
        %v1098 = vrsqrt.pop %v1063
        %v1099 = vmul.f32 %v1098, %v1063
        %v1100 = vmul.f32 %v1099, %v1098
        %v1101 = vmul.f32 0.5, %v1100
        %v1102 = vsub.f32 1.5, %v1101
        %v1103 = vmul.f32 %v1098, %v1102
        %vm1104 = vweird.f32 %v1063
        %vm1105 = vweird.f32 %v1098
        %vm1106 = vmor %vm1104, %vm1105
        %v1107 = vsel %vm1106, %v1098, %v1103
        %v1108 = vrsqrt.pop %v1064
        %v1109 = vmul.f32 %v1108, %v1064
        %v1110 = vmul.f32 %v1109, %v1108
        %v1111 = vmul.f32 0.5, %v1110
        %v1112 = vsub.f32 1.5, %v1111
        %v1113 = vmul.f32 %v1108, %v1112
        %vm1114 = vweird.f32 %v1064
        %vm1115 = vweird.f32 %v1108
        %vm1116 = vmor %vm1114, %vm1115
        %v1117 = vsel %vm1116, %v1108, %v1113
        %v1118 = vrsqrt.pop %v1065
        %v1119 = vmul.f32 %v1118, %v1065
        %v1120 = vmul.f32 %v1119, %v1118
        %v1121 = vmul.f32 0.5, %v1120
        %v1122 = vsub.f32 1.5, %v1121
        %v1123 = vmul.f32 %v1118, %v1122
        %vm1124 = vweird.f32 %v1065
        %vm1125 = vweird.f32 %v1118
        %vm1126 = vmor %vm1124, %vm1125
        %v1127 = vsel %vm1126, %v1118, %v1123
        %v1128 = vrsqrt.pop %v1066
        %v1129 = vmul.f32 %v1128, %v1066
        %v1130 = vmul.f32 %v1129, %v1128
        %v1131 = vmul.f32 0.5, %v1130
        %v1132 = vsub.f32 1.5, %v1131
        %v1133 = vmul.f32 %v1128, %v1132
        %vm1134 = vweird.f32 %v1066
        %vm1135 = vweird.f32 %v1128
        %vm1136 = vmor %vm1134, %vm1135
        %v1137 = vsel %vm1136, %v1128, %v1133
        %v1138 = vrsqrt.pop %v1067
        %v1139 = vmul.f32 %v1138, %v1067
        %v1140 = vmul.f32 %v1139, %v1138
        %v1141 = vmul.f32 0.5, %v1140
        %v1142 = vsub.f32 1.5, %v1141
        %v1143 = vmul.f32 %v1138, %v1142
        %vm1144 = vweird.f32 %v1067
        %vm1145 = vweird.f32 %v1138
        %vm1146 = vmor %vm1144, %vm1145
        %v1147 = vsel %vm1146, %v1138, %v1143
        %v1148 = vmul.f32 %v1012, %v1077
        %v1149 = vmul.f32 %v1013, %v1087
        %v1150 = vmul.f32 %v1014, %v1097
        %v1151 = vmul.f32 %v1015, %v1107
        %v1152 = vmul.f32 %v1016, %v1117
        %v1153 = vmul.f32 %v1017, %v1127
        %v1154 = vmul.f32 %v1018, %v1137
        %v1155 = vmul.f32 %v1019, %v1147
        %v1156 = vld [vmem:[%s3] sm:$0xff]
        %v1157 = vld [vmem:[%s3 + $0x8] sm:$0xff]
        %v1158 = vld [vmem:[%s4] sm:$0x1]
        %v1160 = vperm.slane %v1158, 0
        %v1163 = vsel %vm857, %v1148, 0
        %v1166 = vsel %vm857, %v1149, 0
        %v1169 = vsel %vm857, %v1150, 0
        %v1172 = vsel %vm857, %v1151, 0
        %v1175 = vsel %vm857, %v1152, 0
        %v1178 = vsel %vm857, %v1153, 0
        %v1181 = vsel %vm857, %v1154, 0
        %v1184 = vsel %vm857, %v1155, 0
        %1186 = vmatpush.msra.mxu0 0.0
        %1187 = vmatpush.msra.mxu0 0.0
        %1188 = vmatpush.msra.mxu0 0.0
        %1189 = vmatpush.msra.mxu0 0.0
        %1190 = vmatpush.msra.mxu0 0.0
        %1191 = vmatpush.msra.mxu0 0.0
        %1192 = vmatpush.msra.mxu0 0.0
        %1193 = vmatpush.msra.mxu0 0.0
        %1194 = vmatpush.msra.mxu0 0.0
        %1195 = vmatpush.msra.mxu0 0.0
        %1196 = vmatpush.msra.mxu0 0.0
        %1197 = vmatpush.msra.mxu0 0.0
        %1198 = vmatpush.msra.mxu0 0.0
        %1199 = vmatpush.msra.mxu0 0.0
        %1200 = vmatpush.msra.mxu0 %v1157
        %1201 = vmatpush.msra.mxu0 %v1156
        %1202 = vmatmul.f32.gmra.mxu0 %v1163
        %v1203 = vpop.f32.mrf.mxu0
        %v1204 = vadd.f32 %v1160, %v1203
        %1205 = vmatmul.f32.gmra.mxu0 %v1166
        %v1206 = vpop.f32.mrf.mxu0
        %v1207 = vadd.f32 %v1160, %v1206
        %1208 = vmatmul.f32.gmra.mxu0 %v1169
        %v1209 = vpop.f32.mrf.mxu0
        %v1210 = vadd.f32 %v1160, %v1209
        %1211 = vmatmul.f32.gmra.mxu0 %v1172
        %v1212 = vpop.f32.mrf.mxu0
        %v1213 = vadd.f32 %v1160, %v1212
        %1214 = vmatmul.f32.gmra.mxu0 %v1175
        %v1215 = vpop.f32.mrf.mxu0
        %v1216 = vadd.f32 %v1160, %v1215
        %1217 = vmatmul.f32.gmra.mxu0 %v1178
        %v1218 = vpop.f32.mrf.mxu0
        %v1219 = vadd.f32 %v1160, %v1218
        %1220 = vmatmul.f32.gmra.mxu0 %v1181
        %v1221 = vpop.f32.mrf.mxu0
        %v1222 = vadd.f32 %v1160, %v1221
        %1223 = vmatmul.f32.gmra.mxu0 %v1184
        %v1224 = vpop.f32.mrf.mxu0
        %v1225 = vadd.f32 %v1160, %v1224
        %1226 = vdwg.mxu0
        %v1227 = vmul.f32 %v1204, 0.5
        %v1228 = vmul.f32 %v1207, 0.5
        %v1229 = vmul.f32 %v1210, 0.5
        %v1230 = vmul.f32 %v1213, 0.5
        %v1231 = vmul.f32 %v1216, 0.5
        %v1232 = vmul.f32 %v1219, 0.5
        %v1233 = vmul.f32 %v1222, 0.5
        %v1234 = vmul.f32 %v1225, 0.5
        %v1235 = vmul.f32 %v1204, 0.70710677
        %v1236 = vmul.f32 %v1207, 0.70710677
        %v1237 = vmul.f32 %v1210, 0.70710677
        %v1238 = vmul.f32 %v1213, 0.70710677
        %v1239 = vmul.f32 %v1216, 0.70710677
        %v1240 = vmul.f32 %v1219, 0.70710677
        %v1241 = vmul.f32 %v1222, 0.70710677
        %v1242 = vmul.f32 %v1225, 0.70710677
        %vm1243 = vcmp.ge.f32.partialorder %v1235, 0.0
        %vm1244 = vcmp.ge.f32.partialorder %v1236, 0.0
        %vm1245 = vcmp.ge.f32.partialorder %v1237, 0.0
        %vm1246 = vcmp.ge.f32.partialorder %v1238, 0.0
        %vm1247 = vcmp.ge.f32.partialorder %v1239, 0.0
        %vm1248 = vcmp.ge.f32.partialorder %v1240, 0.0
        %vm1249 = vcmp.ge.f32.partialorder %v1241, 0.0
        %vm1250 = vcmp.ge.f32.partialorder %v1242, 0.0
        %v1251 = vsel %vm1243, 1.0, -1.0
        %v1252 = vsel %vm1244, 1.0, -1.0
        %v1253 = vsel %vm1245, 1.0, -1.0
        %v1254 = vsel %vm1246, 1.0, -1.0
        %v1255 = vsel %vm1247, 1.0, -1.0
        %v1256 = vsel %vm1248, 1.0, -1.0
        %v1257 = vsel %vm1249, 1.0, -1.0
        %v1258 = vsel %vm1250, 1.0, -1.0
        %v1259 = vand.u32 2147483647, %v1235
        %v1260 = vand.u32 2147483647, %v1236
        %v1261 = vand.u32 2147483647, %v1237
        %v1262 = vand.u32 2147483647, %v1238
        %v1263 = vand.u32 2147483647, %v1239
        %v1264 = vand.u32 2147483647, %v1240
        %v1265 = vand.u32 2147483647, %v1241
        %v1266 = vand.u32 2147483647, %v1242
        %v1267 = vmul.f32 %v1259, 0.3275911
        %v1268 = vmul.f32 %v1260, 0.3275911
        %v1269 = vmul.f32 %v1261, 0.3275911
        %v1270 = vmul.f32 %v1262, 0.3275911
        %v1271 = vmul.f32 %v1263, 0.3275911
        %v1272 = vmul.f32 %v1264, 0.3275911
        %v1273 = vmul.f32 %v1265, 0.3275911
        %v1274 = vmul.f32 %v1266, 0.3275911
        %v1275 = vadd.f32 %v1267, 1.0
        %v1276 = vadd.f32 %v1268, 1.0
        %v1277 = vadd.f32 %v1269, 1.0
        %v1278 = vadd.f32 %v1270, 1.0
        %v1279 = vadd.f32 %v1271, 1.0
        %v1280 = vadd.f32 %v1272, 1.0
        %v1281 = vadd.f32 %v1273, 1.0
        %v1282 = vadd.f32 %v1274, 1.0
        %v1283 = vrcp.pop %v1275
        %v1284 = vmul.f32 %v1275, %v1283
        %v1285 = vsub.f32 1.0, %v1284
        %v1286 = vmul.f32 %v1283, %v1285
        %v1287 = vadd.f32 %v1283, %v1286
        %vm1288 = vweird.f32 %v1275
        %vm1289 = vweird.f32 %v1283
        %vm1290 = vmor %vm1288, %vm1289
        %v1291 = vsel %vm1290, %v1283, %v1287
        %v1292 = vand.u32 2147483647, %v1275
        %vm1293 = vcmp.eq.f32.partialorder %v1292, 8.507059e+37
        %v1294 = vand.u32 %v1275, 2147483648
        %v1295 = vor.u32 1.1754944e-38, %v1294
        %v1296 = vsel %vm1293, %v1295, %v1291
        %v1297 = vmul.f32 1.0, %v1296
        %v1298 = vrcp.pop %v1276
        %v1299 = vmul.f32 %v1276, %v1298
        %v1300 = vsub.f32 1.0, %v1299
        %v1301 = vmul.f32 %v1298, %v1300
        %v1302 = vadd.f32 %v1298, %v1301
        %vm1303 = vweird.f32 %v1276
        %vm1304 = vweird.f32 %v1298
        %vm1305 = vmor %vm1303, %vm1304
        %v1306 = vsel %vm1305, %v1298, %v1302
        %v1307 = vand.u32 2147483647, %v1276
        %vm1308 = vcmp.eq.f32.partialorder %v1307, 8.507059e+37
        %v1309 = vand.u32 %v1276, 2147483648
        %v1310 = vor.u32 1.1754944e-38, %v1309
        %v1311 = vsel %vm1308, %v1310, %v1306
        %v1312 = vmul.f32 1.0, %v1311
        %v1313 = vrcp.pop %v1277
        %v1314 = vmul.f32 %v1277, %v1313
        %v1315 = vsub.f32 1.0, %v1314
        %v1316 = vmul.f32 %v1313, %v1315
        %v1317 = vadd.f32 %v1313, %v1316
        %vm1318 = vweird.f32 %v1277
        %vm1319 = vweird.f32 %v1313
        %vm1320 = vmor %vm1318, %vm1319
        %v1321 = vsel %vm1320, %v1313, %v1317
        %v1322 = vand.u32 2147483647, %v1277
        %vm1323 = vcmp.eq.f32.partialorder %v1322, 8.507059e+37
        %v1324 = vand.u32 %v1277, 2147483648
        %v1325 = vor.u32 1.1754944e-38, %v1324
        %v1326 = vsel %vm1323, %v1325, %v1321
        %v1327 = vmul.f32 1.0, %v1326
        %v1328 = vrcp.pop %v1278
        %v1329 = vmul.f32 %v1278, %v1328
        %v1330 = vsub.f32 1.0, %v1329
        %v1331 = vmul.f32 %v1328, %v1330
        %v1332 = vadd.f32 %v1328, %v1331
        %vm1333 = vweird.f32 %v1278
        %vm1334 = vweird.f32 %v1328
        %vm1335 = vmor %vm1333, %vm1334
        %v1336 = vsel %vm1335, %v1328, %v1332
        %v1337 = vand.u32 2147483647, %v1278
        %vm1338 = vcmp.eq.f32.partialorder %v1337, 8.507059e+37
        %v1339 = vand.u32 %v1278, 2147483648
        %v1340 = vor.u32 1.1754944e-38, %v1339
        %v1341 = vsel %vm1338, %v1340, %v1336
        %v1342 = vmul.f32 1.0, %v1341
        %v1343 = vrcp.pop %v1279
        %v1344 = vmul.f32 %v1279, %v1343
        %v1345 = vsub.f32 1.0, %v1344
        %v1346 = vmul.f32 %v1343, %v1345
        %v1347 = vadd.f32 %v1343, %v1346
        %vm1348 = vweird.f32 %v1279
        %vm1349 = vweird.f32 %v1343
        %vm1350 = vmor %vm1348, %vm1349
        %v1351 = vsel %vm1350, %v1343, %v1347
        %v1352 = vand.u32 2147483647, %v1279
        %vm1353 = vcmp.eq.f32.partialorder %v1352, 8.507059e+37
        %v1354 = vand.u32 %v1279, 2147483648
        %v1355 = vor.u32 1.1754944e-38, %v1354
        %v1356 = vsel %vm1353, %v1355, %v1351
        %v1357 = vmul.f32 1.0, %v1356
        %v1358 = vrcp.pop %v1280
        %v1359 = vmul.f32 %v1280, %v1358
        %v1360 = vsub.f32 1.0, %v1359
        %v1361 = vmul.f32 %v1358, %v1360
        %v1362 = vadd.f32 %v1358, %v1361
        %vm1363 = vweird.f32 %v1280
        %vm1364 = vweird.f32 %v1358
        %vm1365 = vmor %vm1363, %vm1364
        %v1366 = vsel %vm1365, %v1358, %v1362
        %v1367 = vand.u32 2147483647, %v1280
        %vm1368 = vcmp.eq.f32.partialorder %v1367, 8.507059e+37
        %v1369 = vand.u32 %v1280, 2147483648
        %v1370 = vor.u32 1.1754944e-38, %v1369
        %v1371 = vsel %vm1368, %v1370, %v1366
        %v1372 = vmul.f32 1.0, %v1371
        %v1373 = vrcp.pop %v1281
        %v1374 = vmul.f32 %v1281, %v1373
        %v1375 = vsub.f32 1.0, %v1374
        %v1376 = vmul.f32 %v1373, %v1375
        %v1377 = vadd.f32 %v1373, %v1376
        %vm1378 = vweird.f32 %v1281
        %vm1379 = vweird.f32 %v1373
        %vm1380 = vmor %vm1378, %vm1379
        %v1381 = vsel %vm1380, %v1373, %v1377
        %v1382 = vand.u32 2147483647, %v1281
        %vm1383 = vcmp.eq.f32.partialorder %v1382, 8.507059e+37
        %v1384 = vand.u32 %v1281, 2147483648
        %v1385 = vor.u32 1.1754944e-38, %v1384
        %v1386 = vsel %vm1383, %v1385, %v1381
        %v1387 = vmul.f32 1.0, %v1386
        %v1388 = vrcp.pop %v1282
        %v1389 = vmul.f32 %v1282, %v1388
        %v1390 = vsub.f32 1.0, %v1389
        %v1391 = vmul.f32 %v1388, %v1390
        %v1392 = vadd.f32 %v1388, %v1391
        %vm1393 = vweird.f32 %v1282
        %vm1394 = vweird.f32 %v1388
        %vm1395 = vmor %vm1393, %vm1394
        %v1396 = vsel %vm1395, %v1388, %v1392
        %v1397 = vand.u32 2147483647, %v1282
        %vm1398 = vcmp.eq.f32.partialorder %v1397, 8.507059e+37
        %v1399 = vand.u32 %v1282, 2147483648
        %v1400 = vor.u32 1.1754944e-38, %v1399
        %v1401 = vsel %vm1398, %v1400, %v1396
        %v1402 = vmul.f32 1.0, %v1401
        %v1403 = vmul.f32 %v1297, 1.0614054
        %v1404 = vmul.f32 %v1312, 1.0614054
        %v1405 = vmul.f32 %v1327, 1.0614054
        %v1406 = vmul.f32 %v1342, 1.0614054
        %v1407 = vmul.f32 %v1357, 1.0614054
        %v1408 = vmul.f32 %v1372, 1.0614054
        %v1409 = vmul.f32 %v1387, 1.0614054
        %v1410 = vmul.f32 %v1402, 1.0614054
        %v1411 = vadd.f32 %v1403, -1.4531521
        %v1412 = vadd.f32 %v1404, -1.4531521
        %v1413 = vadd.f32 %v1405, -1.4531521
        %v1414 = vadd.f32 %v1406, -1.4531521
        %v1415 = vadd.f32 %v1407, -1.4531521
        %v1416 = vadd.f32 %v1408, -1.4531521
        %v1417 = vadd.f32 %v1409, -1.4531521
        %v1418 = vadd.f32 %v1410, -1.4531521
        %v1419 = vmul.f32 %v1297, %v1411
        %v1420 = vmul.f32 %v1312, %v1412
        %v1421 = vmul.f32 %v1327, %v1413
        %v1422 = vmul.f32 %v1342, %v1414
        %v1423 = vmul.f32 %v1357, %v1415
        %v1424 = vmul.f32 %v1372, %v1416
        %v1425 = vmul.f32 %v1387, %v1417
        %v1426 = vmul.f32 %v1402, %v1418
        %v1427 = vadd.f32 %v1419, 1.4214138
        %v1428 = vadd.f32 %v1420, 1.4214138
        %v1429 = vadd.f32 %v1421, 1.4214138
        %v1430 = vadd.f32 %v1422, 1.4214138
        %v1431 = vadd.f32 %v1423, 1.4214138
        %v1432 = vadd.f32 %v1424, 1.4214138
        %v1433 = vadd.f32 %v1425, 1.4214138
        %v1434 = vadd.f32 %v1426, 1.4214138
        %v1435 = vmul.f32 %v1297, %v1427
        %v1436 = vmul.f32 %v1312, %v1428
        %v1437 = vmul.f32 %v1327, %v1429
        %v1438 = vmul.f32 %v1342, %v1430
        %v1439 = vmul.f32 %v1357, %v1431
        %v1440 = vmul.f32 %v1372, %v1432
        %v1441 = vmul.f32 %v1387, %v1433
        %v1442 = vmul.f32 %v1402, %v1434
        %v1443 = vadd.f32 %v1435, -0.28449672
        %v1444 = vadd.f32 %v1436, -0.28449672
        %v1445 = vadd.f32 %v1437, -0.28449672
        %v1446 = vadd.f32 %v1438, -0.28449672
        %v1447 = vadd.f32 %v1439, -0.28449672
        %v1448 = vadd.f32 %v1440, -0.28449672
        %v1449 = vadd.f32 %v1441, -0.28449672
        %v1450 = vadd.f32 %v1442, -0.28449672
        %v1451 = vmul.f32 %v1297, %v1443
        %v1452 = vmul.f32 %v1312, %v1444
        %v1453 = vmul.f32 %v1327, %v1445
        %v1454 = vmul.f32 %v1342, %v1446
        %v1455 = vmul.f32 %v1357, %v1447
        %v1456 = vmul.f32 %v1372, %v1448
        %v1457 = vmul.f32 %v1387, %v1449
        %v1458 = vmul.f32 %v1402, %v1450
        %v1459 = vadd.f32 %v1451, 0.2548296
        %v1460 = vadd.f32 %v1452, 0.2548296
        %v1461 = vadd.f32 %v1453, 0.2548296
        %v1462 = vadd.f32 %v1454, 0.2548296
        %v1463 = vadd.f32 %v1455, 0.2548296
        %v1464 = vadd.f32 %v1456, 0.2548296
        %v1465 = vadd.f32 %v1457, 0.2548296
        %v1466 = vadd.f32 %v1458, 0.2548296
        %v1467 = vmul.f32 %v1297, %v1459
        %v1468 = vmul.f32 %v1312, %v1460
        %v1469 = vmul.f32 %v1327, %v1461
        %v1470 = vmul.f32 %v1342, %v1462
        %v1471 = vmul.f32 %v1357, %v1463
        %v1472 = vmul.f32 %v1372, %v1464
        %v1473 = vmul.f32 %v1387, %v1465
        %v1474 = vmul.f32 %v1402, %v1466
        %v1475 = vsub.f32 0.0, %v1259
        %v1476 = vsub.f32 0.0, %v1260
        %v1477 = vsub.f32 0.0, %v1261
        %v1478 = vsub.f32 0.0, %v1262
        %v1479 = vsub.f32 0.0, %v1263
        %v1480 = vsub.f32 0.0, %v1264
        %v1481 = vsub.f32 0.0, %v1265
        %v1482 = vsub.f32 0.0, %v1266
        %v1483 = vmul.f32 %v1475, %v1259
        %v1484 = vmul.f32 %v1476, %v1260
        %v1485 = vmul.f32 %v1477, %v1261
        %v1486 = vmul.f32 %v1478, %v1262
        %v1487 = vmul.f32 %v1479, %v1263
        %v1488 = vmul.f32 %v1480, %v1264
        %v1489 = vmul.f32 %v1481, %v1265
        %v1490 = vmul.f32 %v1482, %v1266
        %v1491 = vmul.f32 %v1483, 1.442695
        %v1492 = vpow.pop %v1491
        %v1493 = vmul.f32 %v1484, 1.442695
        %v1494 = vpow.pop %v1493
        %v1495 = vmul.f32 %v1485, 1.442695
        %v1496 = vpow.pop %v1495
        %v1497 = vmul.f32 %v1486, 1.442695
        %v1498 = vpow.pop %v1497
        %v1499 = vmul.f32 %v1487, 1.442695
        %v1500 = vpow.pop %v1499
        %v1501 = vmul.f32 %v1488, 1.442695
        %v1502 = vpow.pop %v1501
        %v1503 = vmul.f32 %v1489, 1.442695
        %v1504 = vpow.pop %v1503
        %v1505 = vmul.f32 %v1490, 1.442695
        %v1506 = vpow.pop %v1505
        %v1507 = vmul.f32 %v1467, %v1492
        %v1508 = vmul.f32 %v1468, %v1494
        %v1509 = vmul.f32 %v1469, %v1496
        %v1510 = vmul.f32 %v1470, %v1498
        %v1511 = vmul.f32 %v1471, %v1500
        %v1512 = vmul.f32 %v1472, %v1502
        %v1513 = vmul.f32 %v1473, %v1504
        %v1514 = vmul.f32 %v1474, %v1506
        %v1515 = vsub.f32 1.0, %v1507
        %v1516 = vsub.f32 1.0, %v1508
        %v1517 = vsub.f32 1.0, %v1509
        %v1518 = vsub.f32 1.0, %v1510
        %v1519 = vsub.f32 1.0, %v1511
        %v1520 = vsub.f32 1.0, %v1512
        %v1521 = vsub.f32 1.0, %v1513
        %v1522 = vsub.f32 1.0, %v1514
        %v1523 = vmul.f32 %v1251, %v1515
        %v1524 = vmul.f32 %v1252, %v1516
        %v1525 = vmul.f32 %v1253, %v1517
        %v1526 = vmul.f32 %v1254, %v1518
        %v1527 = vmul.f32 %v1255, %v1519
        %v1528 = vmul.f32 %v1256, %v1520
        %v1529 = vmul.f32 %v1257, %v1521
        %v1530 = vmul.f32 %v1258, %v1522
        %v1531 = vadd.f32 %v1523, 1.0
        %v1532 = vadd.f32 %v1524, 1.0
        %v1533 = vadd.f32 %v1525, 1.0
        %v1534 = vadd.f32 %v1526, 1.0
        %v1535 = vadd.f32 %v1527, 1.0
        %v1536 = vadd.f32 %v1528, 1.0
        %v1537 = vadd.f32 %v1529, 1.0
        %v1538 = vadd.f32 %v1530, 1.0
        %v1539 = vmul.f32 %v1227, %v1531
        %v1540 = vmul.f32 %v1228, %v1532
        %v1541 = vmul.f32 %v1229, %v1533
        %v1542 = vmul.f32 %v1230, %v1534
        %v1543 = vmul.f32 %v1231, %v1535
        %v1544 = vmul.f32 %v1232, %v1536
        %v1545 = vmul.f32 %v1233, %v1537
        %v1546 = vmul.f32 %v1234, %v1538
        %v1547 = vmul.f32 %v1539, %v1539
        %v1548 = vmul.f32 %v1540, %v1540
        %v1549 = vmul.f32 %v1541, %v1541
        %v1550 = vmul.f32 %v1542, %v1542
        %v1551 = vmul.f32 %v1543, %v1543
        %v1552 = vmul.f32 %v1544, %v1544
        %v1553 = vmul.f32 %v1545, %v1545
        %v1554 = vmul.f32 %v1546, %v1546
        %vm1555 = vcmask 523264
        %v1556 = vsel %vm1555, %v1547, 0.0
        %v1557 = vsel %vm1555, %v1548, 0.0
        %v1558 = vadd.f32 %v1556, %v1557
        %v1559 = vrot.slane %v1558, 4
        %v1560 = vadd.f32 %v1558, %v1559
        %v1561 = vrot.slane %v1560, 2
        %v1562 = vadd.f32 %v1560, %v1561
        %v1563 = vrot.slane %v1562, 1
        %v1564 = vadd.f32 %v1562, %v1563
        %v1565 = vsel %vm1555, %v1549, 0.0
        %v1566 = vsel %vm1555, %v1550, 0.0
        %v1567 = vadd.f32 %v1565, %v1566
        %v1568 = vrot.slane %v1567, 4
        %v1569 = vadd.f32 %v1567, %v1568
        %v1570 = vrot.slane %v1569, 2
        %v1571 = vadd.f32 %v1569, %v1570
        %v1572 = vrot.slane %v1571, 1
        %v1573 = vadd.f32 %v1571, %v1572
        %v1574 = vsel %vm1555, %v1551, 0.0
        %v1575 = vsel %vm1555, %v1552, 0.0
        %v1576 = vadd.f32 %v1574, %v1575
        %v1577 = vrot.slane %v1576, 4
        %v1578 = vadd.f32 %v1576, %v1577
        %v1579 = vrot.slane %v1578, 2
        %v1580 = vadd.f32 %v1578, %v1579
        %v1581 = vrot.slane %v1580, 1
        %v1582 = vadd.f32 %v1580, %v1581
        %v1583 = vsel %vm1555, %v1553, 0.0
        %v1584 = vsel %vm1555, %v1554, 0.0
        %v1585 = vadd.f32 %v1583, %v1584
        %v1586 = vrot.slane %v1585, 4
        %v1587 = vadd.f32 %v1585, %v1586
        %v1588 = vrot.slane %v1587, 2
        %v1589 = vadd.f32 %v1587, %v1588
        %v1590 = vrot.slane %v1589, 1
        %v1591 = vadd.f32 %v1589, %v1590
        %v1592 = vrsqrt.pop %v1564
        %v1593 = vmul.f32 %v1592, %v1564
        %v1594 = vmul.f32 %v1593, %v1592
        %v1595 = vmul.f32 0.5, %v1594
        %v1596 = vsub.f32 1.5, %v1595
        %v1597 = vmul.f32 %v1592, %v1596
        %v1598 = vmul.f32 %v1564, %v1597
        %vm1599 = vcmp.eq.f32.partialorder %v1564, inf
        %v1600 = vsel %vm1599, %v1564, %v1598
        %vm1601 = vcmp.eq.f32.partialorder %v1564, 0.0
        %v1602 = vand.u32 %v1564, 2147483648
        %v1603 = vsel %vm1601, %v1602, %v1600
        %v1604 = vrsqrt.pop %v1573
        %v1605 = vmul.f32 %v1604, %v1573
        %v1606 = vmul.f32 %v1605, %v1604
        %v1607 = vmul.f32 0.5, %v1606
        %v1608 = vsub.f32 1.5, %v1607
        %v1609 = vmul.f32 %v1604, %v1608
        %v1610 = vmul.f32 %v1573, %v1609
        %vm1611 = vcmp.eq.f32.partialorder %v1573, inf
        %v1612 = vsel %vm1611, %v1573, %v1610
        %vm1613 = vcmp.eq.f32.partialorder %v1573, 0.0
        %v1614 = vand.u32 %v1573, 2147483648
        %v1615 = vsel %vm1613, %v1614, %v1612
        %v1616 = vrsqrt.pop %v1582
        %v1617 = vmul.f32 %v1616, %v1582
        %v1618 = vmul.f32 %v1617, %v1616
        %v1619 = vmul.f32 0.5, %v1618
        %v1620 = vsub.f32 1.5, %v1619
        %v1621 = vmul.f32 %v1616, %v1620
        %v1622 = vmul.f32 %v1582, %v1621
        %vm1623 = vcmp.eq.f32.partialorder %v1582, inf
        %v1624 = vsel %vm1623, %v1582, %v1622
        %vm1625 = vcmp.eq.f32.partialorder %v1582, 0.0
        %v1626 = vand.u32 %v1582, 2147483648
        %v1627 = vsel %vm1625, %v1626, %v1624
        %v1628 = vrsqrt.pop %v1591
        %v1629 = vmul.f32 %v1628, %v1591
        %v1630 = vmul.f32 %v1629, %v1628
        %v1631 = vmul.f32 0.5, %v1630
        %v1632 = vsub.f32 1.5, %v1631
        %v1633 = vmul.f32 %v1628, %v1632
        %v1634 = vmul.f32 %v1591, %v1633
        %vm1635 = vcmp.eq.f32.partialorder %v1591, inf
        %v1636 = vsel %vm1635, %v1591, %v1634
        %vm1637 = vcmp.eq.f32.partialorder %v1591, 0.0
        %v1638 = vand.u32 %v1591, 2147483648
        %v1639 = vsel %vm1637, %v1638, %v1636
        %v1640 = vsel %vm1555, %v1603, 0.0
        %1641 = vadd.xlane.f32.xlu0 %v1640
        %v1642 = vpop.xlane.xlu0 %1641
        %v1643 = vsel %vm1555, %v1615, 0.0
        %1644 = vadd.xlane.f32.xlu0 %v1643
        %v1645 = vpop.xlane.xlu0 %1644
        %v1646 = vsel %vm1555, %v1627, 0.0
        %1647 = vadd.xlane.f32.xlu0 %v1646
        %v1648 = vpop.xlane.xlu0 %1647
        %v1649 = vsel %vm1555, %v1639, 0.0
        %1650 = vadd.xlane.f32.xlu0 %v1649
        %v1651 = vpop.xlane.xlu0 %1650
        %v1652 = vrcp.pop 64.0
        %v1653 = vmul.f32 64.0, %v1652
        %v1654 = vsub.f32 1.0, %v1653
        %v1655 = vmul.f32 %v1652, %v1654
        %v1656 = vadd.f32 %v1652, %v1655
        %vm1657 = vweird.f32 %v1652
        %v1658 = vsel %vm1657, %v1652, %v1656
        %v1659 = vmul.f32 %v1642, %v1658
        %v1660 = vmul.f32 %v1645, %v1658
        %v1661 = vmul.f32 %v1648, %v1658
        %v1662 = vmul.f32 %v1651, %v1658
        %v1663 = vadd.f32 %v1659, 1e-06
        %v1664 = vadd.f32 %v1660, 1e-06
        %v1665 = vadd.f32 %v1661, 1e-06
        %v1666 = vadd.f32 %v1662, 1e-06
        %v1667 = vrcp.pop %v1663
        %v1668 = vmul.f32 %v1663, %v1667
        %v1669 = vsub.f32 1.0, %v1668
        %v1670 = vmul.f32 %v1667, %v1669
        %v1671 = vadd.f32 %v1667, %v1670
        %vm1672 = vweird.f32 %v1663
        %vm1673 = vweird.f32 %v1667
        %vm1674 = vmor %vm1672, %vm1673
        %v1675 = vsel %vm1674, %v1667, %v1671
        %v1676 = vand.u32 2147483647, %v1663
        %vm1677 = vcmp.eq.f32.partialorder %v1676, 8.507059e+37
        %v1678 = vand.u32 %v1663, 2147483648
        %v1679 = vor.u32 1.1754944e-38, %v1678
        %v1680 = vsel %vm1677, %v1679, %v1675
        %v1681 = vmul.f32 1.0, %v1680
        %v1682 = vrcp.pop %v1664
        %v1683 = vmul.f32 %v1664, %v1682
        %v1684 = vsub.f32 1.0, %v1683
        %v1685 = vmul.f32 %v1682, %v1684
        %v1686 = vadd.f32 %v1682, %v1685
        %vm1687 = vweird.f32 %v1664
        %vm1688 = vweird.f32 %v1682
        %vm1689 = vmor %vm1687, %vm1688
        %v1690 = vsel %vm1689, %v1682, %v1686
        %v1691 = vand.u32 2147483647, %v1664
        %vm1692 = vcmp.eq.f32.partialorder %v1691, 8.507059e+37
        %v1693 = vand.u32 %v1664, 2147483648
        %v1694 = vor.u32 1.1754944e-38, %v1693
        %v1695 = vsel %vm1692, %v1694, %v1690
        %v1696 = vmul.f32 1.0, %v1695
        %v1697 = vrcp.pop %v1665
        %v1698 = vmul.f32 %v1665, %v1697
        %v1699 = vsub.f32 1.0, %v1698
        %v1700 = vmul.f32 %v1697, %v1699
        %v1701 = vadd.f32 %v1697, %v1700
        %vm1702 = vweird.f32 %v1665
        %vm1703 = vweird.f32 %v1697
        %vm1704 = vmor %vm1702, %vm1703
        %v1705 = vsel %vm1704, %v1697, %v1701
        %v1706 = vand.u32 2147483647, %v1665
        %vm1707 = vcmp.eq.f32.partialorder %v1706, 8.507059e+37
        %v1708 = vand.u32 %v1665, 2147483648
        %v1709 = vor.u32 1.1754944e-38, %v1708
        %v1710 = vsel %vm1707, %v1709, %v1705
        %v1711 = vmul.f32 1.0, %v1710
        %v1712 = vrcp.pop %v1666
        %v1713 = vmul.f32 %v1666, %v1712
        %v1714 = vsub.f32 1.0, %v1713
        %v1715 = vmul.f32 %v1712, %v1714
        %v1716 = vadd.f32 %v1712, %v1715
        %vm1717 = vweird.f32 %v1666
        %vm1718 = vweird.f32 %v1712
        %vm1719 = vmor %vm1717, %vm1718
        %v1720 = vsel %vm1719, %v1712, %v1716
        %v1721 = vand.u32 2147483647, %v1666
        %vm1722 = vcmp.eq.f32.partialorder %v1721, 8.507059e+37
        %v1723 = vand.u32 %v1666, 2147483648
        %v1724 = vor.u32 1.1754944e-38, %v1723
        %v1725 = vsel %vm1722, %v1724, %v1720
        %v1726 = vmul.f32 1.0, %v1725
        %v1727 = vmul.f32 %v1603, %v1681
        %v1728 = vmul.f32 %v1615, %v1696
        %v1729 = vmul.f32 %v1627, %v1711
        %v1730 = vmul.f32 %v1639, %v1726
        %v1731 = vld [vmem:[%s6] sm:$0x1]
        %v1733 = vperm.slane %v1731, 0
        %v1735 = vadd.f32 %v1539, %v1733
        %v1736 = vadd.f32 %v1540, %v1733
        %v1737 = vadd.f32 %v1541, %v1733
        %v1738 = vadd.f32 %v1542, %v1733
        %v1739 = vadd.f32 %v1543, %v1733
        %v1740 = vadd.f32 %v1544, %v1733
        %v1741 = vadd.f32 %v1545, %v1733
        %v1742 = vadd.f32 %v1546, %v1733
        %v1743 = vld [vmem:[%s5] sm:$0x1]
        %v1744 = vmul.f32 %v1539, %v1727
        %v1745 = vmul.f32 %v1540, %v1727
        %v1746 = vmul.f32 %v1541, %v1728
        %v1747 = vmul.f32 %v1542, %v1728
        %v1748 = vmul.f32 %v1543, %v1729
        %v1749 = vmul.f32 %v1544, %v1729
        %v1750 = vmul.f32 %v1545, %v1730
        %v1751 = vmul.f32 %v1546, %v1730
        %v1753 = vperm.slane %v1743, 0
        %v1755 = vmul.f32 %v1753, %v1744
        %v1756 = vmul.f32 %v1753, %v1745
        %v1757 = vmul.f32 %v1753, %v1746
        %v1758 = vmul.f32 %v1753, %v1747
        %v1759 = vmul.f32 %v1753, %v1748
        %v1760 = vmul.f32 %v1753, %v1749
        %v1761 = vmul.f32 %v1753, %v1750
        %v1762 = vmul.f32 %v1753, %v1751
        %v1763 = vadd.f32 %v1735, %v1755
        %v1764 = vadd.f32 %v1736, %v1756
        %v1765 = vadd.f32 %v1737, %v1757
        %v1766 = vadd.f32 %v1738, %v1758
        %v1767 = vadd.f32 %v1739, %v1759
        %v1768 = vadd.f32 %v1740, %v1760
        %v1769 = vadd.f32 %v1741, %v1761
        %v1770 = vadd.f32 %v1742, %v1762
        %v1771 = vld [vmem:[%s7] sm:$0xff]
        %v1772 = vld [vmem:[%s7 + $0x8] sm:$0xff]
        %v1773 = vld [vmem:[%s7 + $0x10] sm:$0xff]
        %v1774 = vld [vmem:[%s7 + $0x18] sm:$0xff]
        %v1775 = vld [vmem:[%s7 + $0x20] sm:$0xff]
        %v1776 = vld [vmem:[%s7 + $0x28] sm:$0xff]
        %v1777 = vld [vmem:[%s7 + $0x30] sm:$0xff]
        %v1778 = vld [vmem:[%s7 + $0x38] sm:$0xff]
        %v1779 = vld [vmem:[%s8] sm:$0x1]
        %v1781 = vperm.slane %v1779, 0
        %v1784 = vsel %vm1555, %v1763, 0
        %v1787 = vsel %vm1555, %v1764, 0
        %v1790 = vsel %vm1555, %v1765, 0
        %v1793 = vsel %vm1555, %v1766, 0
        %v1796 = vsel %vm1555, %v1767, 0
        %v1799 = vsel %vm1555, %v1768, 0
        %v1802 = vsel %vm1555, %v1769, 0
        %v1805 = vsel %vm1555, %v1770, 0
        %1807 = vmatpush.msra.mxu0 0.0
        %1808 = vmatpush.msra.mxu0 0.0
        %1809 = vmatpush.msra.mxu0 0.0
        %1810 = vmatpush.msra.mxu0 0.0
        %1811 = vmatpush.msra.mxu0 0.0
        %1812 = vmatpush.msra.mxu0 0.0
        %1813 = vmatpush.msra.mxu0 0.0
        %1814 = vmatpush.msra.mxu0 0.0
        %1815 = vmatpush.msra.mxu0 %v1778
        %1816 = vmatpush.msra.mxu0 %v1777
        %1817 = vmatpush.msra.mxu0 %v1776
        %1818 = vmatpush.msra.mxu0 %v1775
        %1819 = vmatpush.msra.mxu0 %v1774
        %1820 = vmatpush.msra.mxu0 %v1773
        %1821 = vmatpush.msra.mxu0 %v1772
        %1822 = vmatpush.msra.mxu0 %v1771
        %1823 = vmatmul.f32.gmra.mxu0 %v1784
        %v1824 = vpop.f32.mrf.mxu0
        %v1825 = vadd.f32 %v1781, %v1824
        %1826 = vmatmul.f32.gmra.mxu0 %v1787
        %v1827 = vpop.f32.mrf.mxu0
        %v1828 = vadd.f32 %v1781, %v1827
        %1829 = vmatmul.f32.gmra.mxu0 %v1790
        %v1830 = vpop.f32.mrf.mxu0
        %v1831 = vadd.f32 %v1781, %v1830
        %1832 = vmatmul.f32.gmra.mxu0 %v1793
        %v1833 = vpop.f32.mrf.mxu0
        %v1834 = vadd.f32 %v1781, %v1833
        %1835 = vmatmul.f32.gmra.mxu0 %v1796
        %v1836 = vpop.f32.mrf.mxu0
        %v1837 = vadd.f32 %v1781, %v1836
        %1838 = vmatmul.f32.gmra.mxu0 %v1799
        %v1839 = vpop.f32.mrf.mxu0
        %v1840 = vadd.f32 %v1781, %v1839
        %1841 = vmatmul.f32.gmra.mxu0 %v1802
        %v1842 = vpop.f32.mrf.mxu0
        %v1843 = vadd.f32 %v1781, %v1842
        %1844 = vmatmul.f32.gmra.mxu0 %v1805
        %v1845 = vpop.f32.mrf.mxu0
        %v1846 = vadd.f32 %v1781, %v1845
        %1847 = vdwg.mxu0
        %v1848 = vld [vmem:[%s9] sm:$0xff]
        %v1849 = vld [vmem:[%s9 + $0x8] sm:$0xff]
        %1851 = vset.pattern.permute.xlu0 0
        %1852 = vperm.xlu0 %1851, %v1848
        %v1853 = vpop.permute.xlu0 %1852
        %1856 = vset.pattern.permute.xlu0 0
        %1857 = vperm.xlu0 %1856, %v1849
        %v1858 = vpop.permute.xlu0 %1857
        %v1860 = vmul.f32 %v1825, %v1853
        %v1861 = vmul.f32 %v1828, %v1858
        %v1862 = vmul.f32 %v1831, %v1853
        %v1863 = vmul.f32 %v1834, %v1858
        %v1864 = vmul.f32 %v1837, %v1853
        %v1865 = vmul.f32 %v1840, %v1858
        %v1866 = vmul.f32 %v1843, %v1853
        %v1867 = vmul.f32 %v1846, %v1858
        %v1868 = vadd.f32 %v1860, %v383
        %v1869 = vadd.f32 %v1861, %v384
        %v1870 = vadd.f32 %v1862, %v385
        %v1871 = vadd.f32 %v1863, %v386
        %v1872 = vadd.f32 %v1864, %v387
        %v1873 = vadd.f32 %v1865, %v388
        %v1874 = vadd.f32 %v1866, %v389
        %v1875 = vadd.f32 %v1867, %v390
        %1876 = vst.msk [vmem:[%s380] sm:$0xff] %vm857, %v1868
        %1877 = vst.msk [vmem:[%s380 + $0x8] sm:$0xff] %vm857, %v1869
        %1878 = vst.msk [vmem:[%s380 + $0x10] sm:$0xff] %vm857, %v1870
        %1879 = vst.msk [vmem:[%s380 + $0x18] sm:$0xff] %vm857, %v1871
        %1880 = vst.msk [vmem:[%s380 + $0x20] sm:$0xff] %vm857, %v1872
        %1881 = vst.msk [vmem:[%s380 + $0x28] sm:$0xff] %vm857, %v1873
        %1882 = vst.msk [vmem:[%s380 + $0x30] sm:$0xff] %vm857, %v1874
        %1883 = vst.msk [vmem:[%s380 + $0x38] sm:$0xff] %vm857, %v1875
        %s1884 = sand.u32 %s250, 1
        %s1885 = scalar_lea.sflag [#allocation6], %s1884
        %s1886 = sand.u32 %s250, 1
        %s1887 = smul.addr %s1886, 64
        %s1888 = scalar_lea.vmem [#allocation7], %s1887
        // Predicated region
        $region65: #{tpu_custom_call.1} parent=59 // pred_check
          %p1889 = pneg %p260
        $region66: #{tpu_custom_call.1} parent=59 // pred_check_branch
          %1891 = sbr.rel (%p1889) target = $region68
        $region67: #{tpu_custom_call.1} parent=59 // pred_region
          %s1892 = smul.u32 4, %s27
          %1894 = vsyncadd %s1885, 0
          %s1895 = smul.addr %s1892, 2
          %s1896 = smul.addr %s1895, 8
          %s1897 = scalar_lea.hbm %s10, %s1896
          %s1898 = sshll.u32 %s1888, 4
          %s1899 = int_to_ptr.vmem [resolvable:$true] %s1898
          %s1900 = sshll.u32 %s1897, 4
          %s1901 = int_to_ptr.hbm [resolvable:$true] %s1900
          %1906 = dma.vmem_to_hbm [thread:$0]  %s1899, 1024, %s1901, %s1885, 128, 128, 8
        $region68: #{tpu_custom_call.1} parent=59 // pred_fallthru
          _
      $region60: #{tpu_custom_call.1} parent=5 // pred_fallthru
        _
      %p1907 = scmp.le.s32.totalorder 2, %s22
      // Predicated region
      $region69: #{tpu_custom_call.1} parent=5 // pred_check
        %p1908 = pneg %p1907
      $region70: #{tpu_custom_call.1} parent=5 // pred_check_branch
        %1910 = sbr.rel (%p1908) target = $region72
      $region71: #{tpu_custom_call.1} parent=5 // pred_region
        %s1911 = ssub.s32 %s22, 2
        // Predicated region
        $region73: #{tpu_custom_call.1} parent=71 // pred_check
          %p1912 = pneg %p266
        $region74: #{tpu_custom_call.1} parent=71 // pred_check_branch
          %1914 = sbr.rel (%p1912) target = $region76
        $region75: #{tpu_custom_call.1} parent=71 // pred_region
          %s1915 = sand.u32 %s251, 1
          %s1916 = scalar_lea.sflag [#allocation6], %s1915
          %s1917 = sand.u32 %s251, 1
          %s1918 = smul.addr %s1917, 64
          %s1919 = scalar_lea.vmem [#allocation7], %s1918
          %1921 = dma.done %s1916, 1024
        $region76: #{tpu_custom_call.1} parent=71 // pred_fallthru
          _
      $region72: #{tpu_custom_call.1} parent=5 // pred_fallthru
        _
    $region6: #{tpu_custom_call.1} parent=1 // loop_footer
      %s26 = sadd.s32 1, %s22
    $region7: #{tpu_custom_call.1} parent=1 // loop_footer_branch
      %21 = sbr.rel target = $region3
    $region8: #{tpu_custom_call.1} parent=1 // loop_exit
      _
    %1922 = vsyncpa [#allocation5], 1
    %s1923 = scalar_lea.sflag [#allocation5], 1
    %1924 = vsyncpa %s1923, 1
    %1925 = vsyncpa [#allocation6], 1
    %s1926 = scalar_lea.sflag [#allocation6], 1
    %1927 = vsyncpa %s1926, 1

</llo_original>
